<compile_context>
chip_gen: v7x
topology: tpu7x:2x2x1
jax: 0.10.0
libtpu: 0.0.40
codegen_flags: <defaults>
</compile_context>

<pallas_src>
from functools import partial

import jax
import jax.numpy as jnp
from jax import lax
from jax.experimental import pallas as pl
from jax.experimental.pallas import tpu as pltpu

HIDDEN = 4
INPUT = 1
NUM_CLASSES = 1
NUM_LAYERS = 2          # kernel hard-codes the 2-layer bidirectional structure
BIDIRECTIONAL = True
H2 = 2 * HIDDEN

# ---- packed parameter blob layout (rows x 2H lanes); blocks 8-sublane aligned.
ROW_WI0F = 0     # (1, 2H)  [wif0 | 0]          layer-0 fwd input weight row
ROW_WI0B = 1     # (1, 2H)  [0 | wib0]          layer-0 bwd input weight row
ROW_B0   = 2     # (1, 2H)  [bf0 | bb0]         layer-0 fused bias
ROW_B1   = 3     # (1, 2H)  [bf1 | bb1]         layer-1 fused bias
ROW_WFC  = 4     # (1, 2H)  wfc^T               fc weight as a lane row
ROW_BFC  = 5     # (1, 2H)  bfc (replicated)
ROW_W0   = 8     # (2H,2H)  blockdiag(whf0, whb0)   layer-0 recurrent W (fused)
ROW_W1IN = 16    # (2H,2H)  [W1f_in | W1b_in]       layer-1 input W, both dirs
ROW_W1HH = 24    # (H, 2H)  [whf1 | 0]              layer-1 fwd recurrent W
N_ROWS   = 32


def make_rnn_kernel(T, B):
    """Build the kernel with static T, B baked in (full unroll)."""
    H = HIDDEN
    assert NUM_CLASSES == 1  # fc is implemented as a lane reduce

    def tree_sum(vals):
        # balanced add tree -> log-depth on the serial chain
        while len(vals) > 1:
            nxt = [vals[i] + vals[i + 1] for i in range(0, len(vals) - 1, 2)]
            if len(vals) % 2:
                nxt.append(vals[-1])
            vals = nxt
        return vals[0]

    def kernel(x_ref, prm_ref, out_ref):
        x = x_ref[...]                         # (B, T)
        P = prm_ref[...]                       # (N_ROWS, 2H)

        wi0f = P[ROW_WI0F:ROW_WI0F + 1, :]     # (1, 2H)
        wi0b = P[ROW_WI0B:ROW_WI0B + 1, :]
        b0   = P[ROW_B0:ROW_B0 + 1, :]
        b1   = P[ROW_B1:ROW_B1 + 1, :]
        wfc  = P[ROW_WFC:ROW_WFC + 1, :]
        bfc  = P[ROW_BFC:ROW_BFC + 1, 0:1]     # (1, 1)

        # Loop-invariant sublane broadcasts of weight rows, hoisted ONCE
        # (JAX does not CSE broadcast_in_dim inside the unrolled loops).
        W0_rows = [jnp.broadcast_to(P[ROW_W0 + k:ROW_W0 + k + 1, :], (B, H2))
                   for k in range(H2)]
        W1in_rows = [jnp.broadcast_to(P[ROW_W1IN + k:ROW_W1IN + k + 1, :], (B, H2))
                     for k in range(H2)]
        W1hh_rows = [jnp.broadcast_to(P[ROW_W1HH + k:ROW_W1HH + k + 1, :], (B, H2))
                     for k in range(H)]

        # ---- layer-0 fused per-step inputs: fwd input for t=i in lanes 0..3,
        #      bwd input for t=T-1-i in lanes 4..7.  Independent of the
        #      recurrence -> hidden by the scheduler (off the serial chain).
        xin = [x[:, i:i + 1] * wi0f + x[:, T - 1 - i:T - i] * wi0b + b0
               for i in range(T)]                                  # T x (B, 2H)

        # ---- layer-0 fused recurrence: ONE tanh + ONE block-diag matvec per
        #      step covers both directions.
        hs = [None] * T
        h = jnp.tanh(xin[0])                                        # zero h0
        hs[0] = h
        for i in range(1, T):
            rec = tree_sum([h[:, k:k + 1] * W0_rows[k] for k in range(H2)])
            h = jnp.tanh(xin[i] + rec)
            hs[i] = h
        # hs[i][:, 0:H]  = layer-0 fwd hidden at time i
        # hs[i][:, H:2H] = layer-0 bwd hidden at time T-1-i

        # ---- layer-1 per-step input projections, both directions lane-packed,
        #      as VPU broadcast-MACs (no MXU round-trip, no L0 concat).
        def xp1(t):
            prods = ([hs[t][:, k:k + 1] * W1in_rows[k] for k in range(H)] +
                     [hs[T - 1 - t][:, k:k + 1] * W1in_rows[k] for k in range(H, H2)])
            return tree_sum(prods) + b1                             # (B, 2H)

        # ---- layer-1: fwd recurrence lives in lanes 0..3 (W1hh rows are
        #      zero-padded in lanes 4..7), so lanes 4..7 of each step are just
        #      tanh(x_proj); at the final step that IS the backward direction's
        #      output at t=T-1 (zero initial state) -> no separate pass needed.
        h1 = jnp.tanh(xp1(0))
        for t in range(1, T):
            rec1 = tree_sum([h1[:, k:k + 1] * W1hh_rows[k] for k in range(H)])
            h1 = jnp.tanh(xp1(t) + rec1)
        # h1 = [h1f_{T-1} (lanes 0..3), h1b_{T-1} (lanes 4..7)]

        # ---- fc(out[:, -1, :]) as elementwise mul + lane reduce (no MXU).
        out_ref[...] = jnp.sum(h1 * wfc, axis=1, keepdims=True) + bfc

    return kernel


def pack_params(p):
    """Pack every kernel parameter into ONE sublane-aligned f32 blob.

    Call this ONCE (parameters are constant across forward calls); the forward
    then issues exactly two input DMAs (x + blob)."""
    H = HIDDEN
    f32 = jnp.float32
    z1h = jnp.zeros((1, H), f32)
    zhh = jnp.zeros((H, H), f32)

    single = jnp.concatenate([
        jnp.concatenate([p["wif0"], z1h], axis=1),              # ROW_WI0F
        jnp.concatenate([z1h, p["wib0"]], axis=1),              # ROW_WI0B
        jnp.concatenate([p["bf0"], p["bb0"]], axis=1),          # ROW_B0
        jnp.concatenate([p["bf1"], p["bb1"]], axis=1),          # ROW_B1
        jnp.concatenate([p["wfcf"], p["wfcb"]], axis=0).T,      # ROW_WFC
        jnp.broadcast_to(p["bfc"], (1, H2)),                    # ROW_BFC
        jnp.zeros((2, H2), f32),                                # pad rows 6..7
    ], axis=0)                                                  # (8, 2H)

    W0_blk = jnp.concatenate([
        jnp.concatenate([p["whf0"], zhh], axis=1),
        jnp.concatenate([zhh, p["whb0"]], axis=1)], axis=0)     # (2H, 2H)

    W1f_in = jnp.concatenate([p["wif1f"], p["wif1b"]], axis=0)  # (2H, H) fwd dir
    W1b_in = jnp.concatenate([p["wib1f"], p["wib1b"]], axis=0)  # (2H, H) bwd dir
    W1in = jnp.concatenate([W1f_in, W1b_in], axis=1)            # (2H, 2H)

    W1hh = jnp.concatenate([p["whf1"], zhh], axis=1)            # (H, 2H)

    blob = jnp.concatenate(
        [single, W0_blk, W1in, W1hh, jnp.zeros((4, H2), f32)], axis=0)
    assert blob.shape == (N_ROWS, H2)
    # NOTE: p["whb1"] (layer-1 backward W_hh) never affects out[:, -1, :] with a
    # zero initial state, so it is intentionally not packed.
    return blob


def rnn_forward(x, blob):
    """x: (B, input_size, T) float32, blob: pack_params(p). Returns (B, C)."""
    B, I, T = x.shape
    assert I == INPUT
    x2 = x.reshape(B, T).astype(jnp.float32)    # squeeze the size-1 feature dim

    vmem = pl.BlockSpec(memory_space=pltpu.MemorySpace.VMEM)
    return pl.pallas_call(
        make_rnn_kernel(T, B),
        out_shape=jax.ShapeDtypeStruct((B, NUM_CLASSES), jnp.float32),
        in_specs=[vmem, vmem],
        out_specs=vmem,
    )(x2, blob)
    # TODO(synk): if batch size is ever scaled up, add a grid over B with
    # dimension_semantics=("parallel",) so v7x can use both TensorCores.


# ------------------------- parameter init (deterministic, torch-style) ------
def init_params(key):
    k = 1.0 / jnp.sqrt(jnp.float32(HIDDEN))

    def unif(key, shape):
        return jax.random.uniform(key, shape, jnp.float32, -k, k)

    keys = iter(jax.random.split(key, 32))
    p = {}
    # layer 0 (input_size -> H), both directions; biases = b_ih + b_hh.
    for d in ("f", "b"):
        p[f"wi{d}0"] = unif(next(keys), (INPUT, HIDDEN))          # W_ih^T
        p[f"wh{d}0"] = unif(next(keys), (HIDDEN, HIDDEN))         # W_hh^T
        p[f"b{d}0"] = unif(next(keys), (1, HIDDEN)) + unif(next(keys), (1, HIDDEN))
    # layer 1 (2H -> H), input weights split over the two halves of the
    # concatenated layer-0 output.
    for d in ("f", "b"):
        p[f"wi{d}1f"] = unif(next(keys), (HIDDEN, HIDDEN))
        p[f"wi{d}1b"] = unif(next(keys), (HIDDEN, HIDDEN))
        p[f"wh{d}1"] = unif(next(keys), (HIDDEN, HIDDEN))
        p[f"b{d}1"] = unif(next(keys), (1, HIDDEN)) + unif(next(keys), (1, HIDDEN))
    # fc: Linear(2H, num_classes), split over the two halves.
    kf = 1.0 / jnp.sqrt(jnp.float32(2 * HIDDEN))
    p["wfcf"] = jax.random.uniform(next(keys), (HIDDEN, NUM_CLASSES), jnp.float32, -kf, kf)
    p["wfcb"] = jax.random.uniform(next(keys), (HIDDEN, NUM_CLASSES), jnp.float32, -kf, kf)
    p["bfc"] = jax.random.uniform(next(keys), (1, NUM_CLASSES), jnp.float32, -kf, kf)
    return p


# ------------------------- pure-JAX reference (PyTorch semantics) -----------
def rnn_reference(x, p):
    B, I, T = x.shape
    xs = jnp.transpose(x, (0, 2, 1))                      # (B, T, I)  (batch_first)

    def run_dir(seq, w_ih, w_hh, b):                      # seq: (B, T, F)
        def step(h, x_t):
            h_new = jnp.tanh(x_t @ w_ih + h @ w_hh + b)
            return h_new, h_new
        _, hsq = lax.scan(step, jnp.zeros((B, HIDDEN), jnp.float32),
                          jnp.transpose(seq, (1, 0, 2)))
        return jnp.transpose(hsq, (1, 0, 2))              # (B, T, H)

    f0 = run_dir(xs, p["wif0"], p["whf0"], p["bf0"])
    b0 = run_dir(xs[:, ::-1], p["wib0"], p["whb0"], p["bb0"])[:, ::-1]
    l0 = jnp.concatenate([f0, b0], axis=-1)               # (B, T, 2H)

    w1f = jnp.concatenate([p["wif1f"], p["wif1b"]], axis=0)
    w1b = jnp.concatenate([p["wib1f"], p["wib1b"]], axis=0)
    f1 = run_dir(l0, w1f, p["whf1"], p["bf1"])
    b1 = run_dir(l0[:, ::-1], w1b, p["whb1"], p["bb1"])[:, ::-1]
    out = jnp.concatenate([f1, b1], axis=-1)[:, -1, :]    # (B, 2H)

    wfc = jnp.concatenate([p["wfcf"], p["wfcb"]], axis=0)
    return out @ wfc + p["bfc"]


if __name__ == "__main__":
    key = jax.random.PRNGKey(0)
    kx, kp = jax.random.split(key)

    B, T = 2, 8
    x = jax.random.normal(kx, (B, INPUT, T), jnp.float32)   # (batch, input_size, seq)
    params = init_params(kp)
    blob = jax.block_until_ready(pack_params(params))       # packed ONCE, reused

    fwd = jax.jit(rnn_forward)
    out = jax.block_until_ready(fwd(x, blob))

    ref = rnn_reference(x, params)
    assert out.shape == (B, NUM_CLASSES)
    if not jnp.allclose(out, ref, atol=1e-5, rtol=1e-5):
        raise RuntimeError(f"mismatch: pallas={out} ref={ref}")
    print("KERNEL_OK")
</pallas_src>

<mosaic_0001>
module attributes {stable_mosaic.version = 11 : i64} {
  func.func @kernel(%arg0: memref<2x8xf32, #tpu.memory_space<vmem>>, %arg1: memref<32x8xf32, #tpu.memory_space<vmem>>, %arg2: memref<2x1xf32, #tpu.memory_space<vmem>>) attributes {dimension_semantics = [], scalar_prefetch = 0 : i64, scratch_operands = 0 : i64, tpu.core_type = #tpu.core_type<tc>} {
    %c0 = arith.constant 0 : index
    %c0_0 = arith.constant 0 : index
    %0 = vector.load %arg0[%c0, %c0_0] : memref<2x8xf32, #tpu.memory_space<vmem>>, vector<2x8xf32>
    %c0_1 = arith.constant 0 : index
    %c0_2 = arith.constant 0 : index
    %1 = vector.load %arg1[%c0_1, %c0_2] : memref<32x8xf32, #tpu.memory_space<vmem>>, vector<32x8xf32>
    %2 = vector.extract_strided_slice %1 {offsets = [0, 0], sizes = [1, 8], strides = [1, 1]} : vector<32x8xf32> to vector<1x8xf32>
    %3 = vector.extract_strided_slice %1 {offsets = [1, 0], sizes = [1, 8], strides = [1, 1]} : vector<32x8xf32> to vector<1x8xf32>
    %4 = vector.extract_strided_slice %1 {offsets = [2, 0], sizes = [1, 8], strides = [1, 1]} : vector<32x8xf32> to vector<1x8xf32>
    %5 = vector.extract_strided_slice %1 {offsets = [3, 0], sizes = [1, 8], strides = [1, 1]} : vector<32x8xf32> to vector<1x8xf32>
    %6 = vector.extract_strided_slice %1 {offsets = [4, 0], sizes = [1, 8], strides = [1, 1]} : vector<32x8xf32> to vector<1x8xf32>
    %7 = vector.extract_strided_slice %1 {offsets = [5, 0], sizes = [1, 1], strides = [1, 1]} : vector<32x8xf32> to vector<1x1xf32>
    %8 = vector.extract_strided_slice %1 {offsets = [8, 0], sizes = [1, 8], strides = [1, 1]} : vector<32x8xf32> to vector<1x8xf32>
    %9 = vector.shape_cast %8 : vector<1x8xf32> to vector<1x8xf32>
    %10 = vector.broadcast %9 : vector<1x8xf32> to vector<2x8xf32>
    %11 = vector.extract_strided_slice %1 {offsets = [9, 0], sizes = [1, 8], strides = [1, 1]} : vector<32x8xf32> to vector<1x8xf32>
    %12 = vector.shape_cast %11 : vector<1x8xf32> to vector<1x8xf32>
    %13 = vector.broadcast %12 : vector<1x8xf32> to vector<2x8xf32>
    %14 = vector.extract_strided_slice %1 {offsets = [10, 0], sizes = [1, 8], strides = [1, 1]} : vector<32x8xf32> to vector<1x8xf32>
    %15 = vector.shape_cast %14 : vector<1x8xf32> to vector<1x8xf32>
    %16 = vector.broadcast %15 : vector<1x8xf32> to vector<2x8xf32>
    %17 = vector.extract_strided_slice %1 {offsets = [11, 0], sizes = [1, 8], strides = [1, 1]} : vector<32x8xf32> to vector<1x8xf32>
    %18 = vector.shape_cast %17 : vector<1x8xf32> to vector<1x8xf32>
    %19 = vector.broadcast %18 : vector<1x8xf32> to vector<2x8xf32>
    %20 = vector.extract_strided_slice %1 {offsets = [12, 0], sizes = [1, 8], strides = [1, 1]} : vector<32x8xf32> to vector<1x8xf32>
    %21 = vector.shape_cast %20 : vector<1x8xf32> to vector<1x8xf32>
    %22 = vector.broadcast %21 : vector<1x8xf32> to vector<2x8xf32>
    %23 = vector.extract_strided_slice %1 {offsets = [13, 0], sizes = [1, 8], strides = [1, 1]} : vector<32x8xf32> to vector<1x8xf32>
    %24 = vector.shape_cast %23 : vector<1x8xf32> to vector<1x8xf32>
    %25 = vector.broadcast %24 : vector<1x8xf32> to vector<2x8xf32>
    %26 = vector.extract_strided_slice %1 {offsets = [14, 0], sizes = [1, 8], strides = [1, 1]} : vector<32x8xf32> to vector<1x8xf32>
    %27 = vector.shape_cast %26 : vector<1x8xf32> to vector<1x8xf32>
    %28 = vector.broadcast %27 : vector<1x8xf32> to vector<2x8xf32>
    %29 = vector.extract_strided_slice %1 {offsets = [15, 0], sizes = [1, 8], strides = [1, 1]} : vector<32x8xf32> to vector<1x8xf32>
    %30 = vector.shape_cast %29 : vector<1x8xf32> to vector<1x8xf32>
    %31 = vector.broadcast %30 : vector<1x8xf32> to vector<2x8xf32>
    %32 = vector.extract_strided_slice %1 {offsets = [16, 0], sizes = [1, 8], strides = [1, 1]} : vector<32x8xf32> to vector<1x8xf32>
    %33 = vector.shape_cast %32 : vector<1x8xf32> to vector<1x8xf32>
    %34 = vector.broadcast %33 : vector<1x8xf32> to vector<2x8xf32>
    %35 = vector.extract_strided_slice %1 {offsets = [17, 0], sizes = [1, 8], strides = [1, 1]} : vector<32x8xf32> to vector<1x8xf32>
    %36 = vector.shape_cast %35 : vector<1x8xf32> to vector<1x8xf32>
    %37 = vector.broadcast %36 : vector<1x8xf32> to vector<2x8xf32>
    %38 = vector.extract_strided_slice %1 {offsets = [18, 0], sizes = [1, 8], strides = [1, 1]} : vector<32x8xf32> to vector<1x8xf32>
    %39 = vector.shape_cast %38 : vector<1x8xf32> to vector<1x8xf32>
    %40 = vector.broadcast %39 : vector<1x8xf32> to vector<2x8xf32>
    %41 = vector.extract_strided_slice %1 {offsets = [19, 0], sizes = [1, 8], strides = [1, 1]} : vector<32x8xf32> to vector<1x8xf32>
    %42 = vector.shape_cast %41 : vector<1x8xf32> to vector<1x8xf32>
    %43 = vector.broadcast %42 : vector<1x8xf32> to vector<2x8xf32>
    %44 = vector.extract_strided_slice %1 {offsets = [20, 0], sizes = [1, 8], strides = [1, 1]} : vector<32x8xf32> to vector<1x8xf32>
    %45 = vector.shape_cast %44 : vector<1x8xf32> to vector<1x8xf32>
    %46 = vector.broadcast %45 : vector<1x8xf32> to vector<2x8xf32>
    %47 = vector.extract_strided_slice %1 {offsets = [21, 0], sizes = [1, 8], strides = [1, 1]} : vector<32x8xf32> to vector<1x8xf32>
    %48 = vector.shape_cast %47 : vector<1x8xf32> to vector<1x8xf32>
    %49 = vector.broadcast %48 : vector<1x8xf32> to vector<2x8xf32>
    %50 = vector.extract_strided_slice %1 {offsets = [22, 0], sizes = [1, 8], strides = [1, 1]} : vector<32x8xf32> to vector<1x8xf32>
    %51 = vector.shape_cast %50 : vector<1x8xf32> to vector<1x8xf32>
    %52 = vector.broadcast %51 : vector<1x8xf32> to vector<2x8xf32>
    %53 = vector.extract_strided_slice %1 {offsets = [23, 0], sizes = [1, 8], strides = [1, 1]} : vector<32x8xf32> to vector<1x8xf32>
    %54 = vector.shape_cast %53 : vector<1x8xf32> to vector<1x8xf32>
    %55 = vector.broadcast %54 : vector<1x8xf32> to vector<2x8xf32>
    %56 = vector.extract_strided_slice %1 {offsets = [24, 0], sizes = [1, 8], strides = [1, 1]} : vector<32x8xf32> to vector<1x8xf32>
    %57 = vector.shape_cast %56 : vector<1x8xf32> to vector<1x8xf32>
    %58 = vector.broadcast %57 : vector<1x8xf32> to vector<2x8xf32>
    %59 = vector.extract_strided_slice %1 {offsets = [25, 0], sizes = [1, 8], strides = [1, 1]} : vector<32x8xf32> to vector<1x8xf32>
    %60 = vector.shape_cast %59 : vector<1x8xf32> to vector<1x8xf32>
    %61 = vector.broadcast %60 : vector<1x8xf32> to vector<2x8xf32>
    %62 = vector.extract_strided_slice %1 {offsets = [26, 0], sizes = [1, 8], strides = [1, 1]} : vector<32x8xf32> to vector<1x8xf32>
    %63 = vector.shape_cast %62 : vector<1x8xf32> to vector<1x8xf32>
    %64 = vector.broadcast %63 : vector<1x8xf32> to vector<2x8xf32>
    %65 = vector.extract_strided_slice %1 {offsets = [27, 0], sizes = [1, 8], strides = [1, 1]} : vector<32x8xf32> to vector<1x8xf32>
    %66 = vector.shape_cast %65 : vector<1x8xf32> to vector<1x8xf32>
    %67 = vector.broadcast %66 : vector<1x8xf32> to vector<2x8xf32>
    %68 = vector.extract_strided_slice %0 {offsets = [0, 0], sizes = [2, 1], strides = [1, 1]} : vector<2x8xf32> to vector<2x1xf32>
    %69 = vector.broadcast %68 : vector<2x1xf32> to vector<2x8xf32>
    %70 = vector.broadcast %2 : vector<1x8xf32> to vector<2x8xf32>
    %71 = arith.mulf %69, %70 : vector<2x8xf32>
    %72 = vector.extract_strided_slice %0 {offsets = [0, 7], sizes = [2, 1], strides = [1, 1]} : vector<2x8xf32> to vector<2x1xf32>
    %73 = vector.broadcast %72 : vector<2x1xf32> to vector<2x8xf32>
    %74 = vector.broadcast %3 : vector<1x8xf32> to vector<2x8xf32>
    %75 = arith.mulf %73, %74 : vector<2x8xf32>
    %76 = arith.addf %71, %75 : vector<2x8xf32>
    %77 = vector.broadcast %4 : vector<1x8xf32> to vector<2x8xf32>
    %78 = arith.addf %76, %77 : vector<2x8xf32>
    %79 = vector.extract_strided_slice %0 {offsets = [0, 1], sizes = [2, 1], strides = [1, 1]} : vector<2x8xf32> to vector<2x1xf32>
    %80 = vector.broadcast %79 : vector<2x1xf32> to vector<2x8xf32>
    %81 = vector.broadcast %2 : vector<1x8xf32> to vector<2x8xf32>
    %82 = arith.mulf %80, %81 : vector<2x8xf32>
    %83 = vector.extract_strided_slice %0 {offsets = [0, 6], sizes = [2, 1], strides = [1, 1]} : vector<2x8xf32> to vector<2x1xf32>
    %84 = vector.broadcast %83 : vector<2x1xf32> to vector<2x8xf32>
    %85 = vector.broadcast %3 : vector<1x8xf32> to vector<2x8xf32>
    %86 = arith.mulf %84, %85 : vector<2x8xf32>
    %87 = arith.addf %82, %86 : vector<2x8xf32>
    %88 = vector.broadcast %4 : vector<1x8xf32> to vector<2x8xf32>
    %89 = arith.addf %87, %88 : vector<2x8xf32>
    %90 = vector.extract_strided_slice %0 {offsets = [0, 2], sizes = [2, 1], strides = [1, 1]} : vector<2x8xf32> to vector<2x1xf32>
    %91 = vector.broadcast %90 : vector<2x1xf32> to vector<2x8xf32>
    %92 = vector.broadcast %2 : vector<1x8xf32> to vector<2x8xf32>
    %93 = arith.mulf %91, %92 : vector<2x8xf32>
    %94 = vector.extract_strided_slice %0 {offsets = [0, 5], sizes = [2, 1], strides = [1, 1]} : vector<2x8xf32> to vector<2x1xf32>
    %95 = vector.broadcast %94 : vector<2x1xf32> to vector<2x8xf32>
    %96 = vector.broadcast %3 : vector<1x8xf32> to vector<2x8xf32>
    %97 = arith.mulf %95, %96 : vector<2x8xf32>
    %98 = arith.addf %93, %97 : vector<2x8xf32>
    %99 = vector.broadcast %4 : vector<1x8xf32> to vector<2x8xf32>
    %100 = arith.addf %98, %99 : vector<2x8xf32>
    %101 = vector.extract_strided_slice %0 {offsets = [0, 3], sizes = [2, 1], strides = [1, 1]} : vector<2x8xf32> to vector<2x1xf32>
    %102 = vector.broadcast %101 : vector<2x1xf32> to vector<2x8xf32>
    %103 = vector.broadcast %2 : vector<1x8xf32> to vector<2x8xf32>
    %104 = arith.mulf %102, %103 : vector<2x8xf32>
    %105 = vector.extract_strided_slice %0 {offsets = [0, 4], sizes = [2, 1], strides = [1, 1]} : vector<2x8xf32> to vector<2x1xf32>
    %106 = vector.broadcast %105 : vector<2x1xf32> to vector<2x8xf32>
    %107 = vector.broadcast %3 : vector<1x8xf32> to vector<2x8xf32>
    %108 = arith.mulf %106, %107 : vector<2x8xf32>
    %109 = arith.addf %104, %108 : vector<2x8xf32>
    %110 = vector.broadcast %4 : vector<1x8xf32> to vector<2x8xf32>
    %111 = arith.addf %109, %110 : vector<2x8xf32>
    %112 = vector.extract_strided_slice %0 {offsets = [0, 4], sizes = [2, 1], strides = [1, 1]} : vector<2x8xf32> to vector<2x1xf32>
    %113 = vector.broadcast %112 : vector<2x1xf32> to vector<2x8xf32>
    %114 = vector.broadcast %2 : vector<1x8xf32> to vector<2x8xf32>
    %115 = arith.mulf %113, %114 : vector<2x8xf32>
    %116 = vector.extract_strided_slice %0 {offsets = [0, 3], sizes = [2, 1], strides = [1, 1]} : vector<2x8xf32> to vector<2x1xf32>
    %117 = vector.broadcast %116 : vector<2x1xf32> to vector<2x8xf32>
    %118 = vector.broadcast %3 : vector<1x8xf32> to vector<2x8xf32>
    %119 = arith.mulf %117, %118 : vector<2x8xf32>
    %120 = arith.addf %115, %119 : vector<2x8xf32>
    %121 = vector.broadcast %4 : vector<1x8xf32> to vector<2x8xf32>
    %122 = arith.addf %120, %121 : vector<2x8xf32>
    %123 = vector.extract_strided_slice %0 {offsets = [0, 5], sizes = [2, 1], strides = [1, 1]} : vector<2x8xf32> to vector<2x1xf32>
    %124 = vector.broadcast %123 : vector<2x1xf32> to vector<2x8xf32>
    %125 = vector.broadcast %2 : vector<1x8xf32> to vector<2x8xf32>
    %126 = arith.mulf %124, %125 : vector<2x8xf32>
    %127 = vector.extract_strided_slice %0 {offsets = [0, 2], sizes = [2, 1], strides = [1, 1]} : vector<2x8xf32> to vector<2x1xf32>
    %128 = vector.broadcast %127 : vector<2x1xf32> to vector<2x8xf32>
    %129 = vector.broadcast %3 : vector<1x8xf32> to vector<2x8xf32>
    %130 = arith.mulf %128, %129 : vector<2x8xf32>
    %131 = arith.addf %126, %130 : vector<2x8xf32>
    %132 = vector.broadcast %4 : vector<1x8xf32> to vector<2x8xf32>
    %133 = arith.addf %131, %132 : vector<2x8xf32>
    %134 = vector.extract_strided_slice %0 {offsets = [0, 6], sizes = [2, 1], strides = [1, 1]} : vector<2x8xf32> to vector<2x1xf32>
    %135 = vector.broadcast %134 : vector<2x1xf32> to vector<2x8xf32>
    %136 = vector.broadcast %2 : vector<1x8xf32> to vector<2x8xf32>
    %137 = arith.mulf %135, %136 : vector<2x8xf32>
    %138 = vector.extract_strided_slice %0 {offsets = [0, 1], sizes = [2, 1], strides = [1, 1]} : vector<2x8xf32> to vector<2x1xf32>
    %139 = vector.broadcast %138 : vector<2x1xf32> to vector<2x8xf32>
    %140 = vector.broadcast %3 : vector<1x8xf32> to vector<2x8xf32>
    %141 = arith.mulf %139, %140 : vector<2x8xf32>
    %142 = arith.addf %137, %141 : vector<2x8xf32>
    %143 = vector.broadcast %4 : vector<1x8xf32> to vector<2x8xf32>
    %144 = arith.addf %142, %143 : vector<2x8xf32>
    %145 = vector.extract_strided_slice %0 {offsets = [0, 7], sizes = [2, 1], strides = [1, 1]} : vector<2x8xf32> to vector<2x1xf32>
    %146 = vector.broadcast %145 : vector<2x1xf32> to vector<2x8xf32>
    %147 = vector.broadcast %2 : vector<1x8xf32> to vector<2x8xf32>
    %148 = arith.mulf %146, %147 : vector<2x8xf32>
    %149 = vector.extract_strided_slice %0 {offsets = [0, 0], sizes = [2, 1], strides = [1, 1]} : vector<2x8xf32> to vector<2x1xf32>
    %150 = vector.broadcast %149 : vector<2x1xf32> to vector<2x8xf32>
    %151 = vector.broadcast %3 : vector<1x8xf32> to vector<2x8xf32>
    %152 = arith.mulf %150, %151 : vector<2x8xf32>
    %153 = arith.addf %148, %152 : vector<2x8xf32>
    %154 = vector.broadcast %4 : vector<1x8xf32> to vector<2x8xf32>
    %155 = arith.addf %153, %154 : vector<2x8xf32>
    %156 = math.tanh %78 : vector<2x8xf32>
    %157 = vector.extract_strided_slice %156 {offsets = [0, 0], sizes = [2, 1], strides = [1, 1]} : vector<2x8xf32> to vector<2x1xf32>
    %158 = vector.broadcast %157 : vector<2x1xf32> to vector<2x8xf32>
    %159 = arith.mulf %158, %10 : vector<2x8xf32>
    %160 = vector.extract_strided_slice %156 {offsets = [0, 1], sizes = [2, 1], strides = [1, 1]} : vector<2x8xf32> to vector<2x1xf32>
    %161 = vector.broadcast %160 : vector<2x1xf32> to vector<2x8xf32>
    %162 = arith.mulf %161, %13 : vector<2x8xf32>
    %163 = vector.extract_strided_slice %156 {offsets = [0, 2], sizes = [2, 1], strides = [1, 1]} : vector<2x8xf32> to vector<2x1xf32>
    %164 = vector.broadcast %163 : vector<2x1xf32> to vector<2x8xf32>
    %165 = arith.mulf %164, %16 : vector<2x8xf32>
    %166 = vector.extract_strided_slice %156 {offsets = [0, 3], sizes = [2, 1], strides = [1, 1]} : vector<2x8xf32> to vector<2x1xf32>
    %167 = vector.broadcast %166 : vector<2x1xf32> to vector<2x8xf32>
    %168 = arith.mulf %167, %19 : vector<2x8xf32>
    %169 = vector.extract_strided_slice %156 {offsets = [0, 4], sizes = [2, 1], strides = [1, 1]} : vector<2x8xf32> to vector<2x1xf32>
    %170 = vector.broadcast %169 : vector<2x1xf32> to vector<2x8xf32>
    %171 = arith.mulf %170, %22 : vector<2x8xf32>
    %172 = vector.extract_strided_slice %156 {offsets = [0, 5], sizes = [2, 1], strides = [1, 1]} : vector<2x8xf32> to vector<2x1xf32>
    %173 = vector.broadcast %172 : vector<2x1xf32> to vector<2x8xf32>
    %174 = arith.mulf %173, %25 : vector<2x8xf32>
    %175 = vector.extract_strided_slice %156 {offsets = [0, 6], sizes = [2, 1], strides = [1, 1]} : vector<2x8xf32> to vector<2x1xf32>
    %176 = vector.broadcast %175 : vector<2x1xf32> to vector<2x8xf32>
    %177 = arith.mulf %176, %28 : vector<2x8xf32>
    %178 = vector.extract_strided_slice %156 {offsets = [0, 7], sizes = [2, 1], strides = [1, 1]} : vector<2x8xf32> to vector<2x1xf32>
    %179 = vector.broadcast %178 : vector<2x1xf32> to vector<2x8xf32>
    %180 = arith.mulf %179, %31 : vector<2x8xf32>
    %181 = arith.addf %159, %162 : vector<2x8xf32>
    %182 = arith.addf %165, %168 : vector<2x8xf32>
    %183 = arith.addf %171, %174 : vector<2x8xf32>
    %184 = arith.addf %177, %180 : vector<2x8xf32>
    %185 = arith.addf %181, %182 : vector<2x8xf32>
    %186 = arith.addf %183, %184 : vector<2x8xf32>
    %187 = arith.addf %185, %186 : vector<2x8xf32>
    %188 = arith.addf %89, %187 : vector<2x8xf32>
    %189 = math.tanh %188 : vector<2x8xf32>
    %190 = vector.extract_strided_slice %189 {offsets = [0, 0], sizes = [2, 1], strides = [1, 1]} : vector<2x8xf32> to vector<2x1xf32>
    %191 = vector.broadcast %190 : vector<2x1xf32> to vector<2x8xf32>
    %192 = arith.mulf %191, %10 : vector<2x8xf32>
    %193 = vector.extract_strided_slice %189 {offsets = [0, 1], sizes = [2, 1], strides = [1, 1]} : vector<2x8xf32> to vector<2x1xf32>
    %194 = vector.broadcast %193 : vector<2x1xf32> to vector<2x8xf32>
    %195 = arith.mulf %194, %13 : vector<2x8xf32>
    %196 = vector.extract_strided_slice %189 {offsets = [0, 2], sizes = [2, 1], strides = [1, 1]} : vector<2x8xf32> to vector<2x1xf32>
    %197 = vector.broadcast %196 : vector<2x1xf32> to vector<2x8xf32>
    %198 = arith.mulf %197, %16 : vector<2x8xf32>
    %199 = vector.extract_strided_slice %189 {offsets = [0, 3], sizes = [2, 1], strides = [1, 1]} : vector<2x8xf32> to vector<2x1xf32>
    %200 = vector.broadcast %199 : vector<2x1xf32> to vector<2x8xf32>
    %201 = arith.mulf %200, %19 : vector<2x8xf32>
    %202 = vector.extract_strided_slice %189 {offsets = [0, 4], sizes = [2, 1], strides = [1, 1]} : vector<2x8xf32> to vector<2x1xf32>
    %203 = vector.broadcast %202 : vector<2x1xf32> to vector<2x8xf32>
    %204 = arith.mulf %203, %22 : vector<2x8xf32>
    %205 = vector.extract_strided_slice %189 {offsets = [0, 5], sizes = [2, 1], strides = [1, 1]} : vector<2x8xf32> to vector<2x1xf32>
    %206 = vector.broadcast %205 : vector<2x1xf32> to vector<2x8xf32>
    %207 = arith.mulf %206, %25 : vector<2x8xf32>
    %208 = vector.extract_strided_slice %189 {offsets = [0, 6], sizes = [2, 1], strides = [1, 1]} : vector<2x8xf32> to vector<2x1xf32>
    %209 = vector.broadcast %208 : vector<2x1xf32> to vector<2x8xf32>
    %210 = arith.mulf %209, %28 : vector<2x8xf32>
    %211 = vector.extract_strided_slice %189 {offsets = [0, 7], sizes = [2, 1], strides = [1, 1]} : vector<2x8xf32> to vector<2x1xf32>
    %212 = vector.broadcast %211 : vector<2x1xf32> to vector<2x8xf32>
    %213 = arith.mulf %212, %31 : vector<2x8xf32>
    %214 = arith.addf %192, %195 : vector<2x8xf32>
    %215 = arith.addf %198, %201 : vector<2x8xf32>
    %216 = arith.addf %204, %207 : vector<2x8xf32>
    %217 = arith.addf %210, %213 : vector<2x8xf32>
    %218 = arith.addf %214, %215 : vector<2x8xf32>
    %219 = arith.addf %216, %217 : vector<2x8xf32>
    %220 = arith.addf %218, %219 : vector<2x8xf32>
    %221 = arith.addf %100, %220 : vector<2x8xf32>
    %222 = math.tanh %221 : vector<2x8xf32>
    %223 = vector.extract_strided_slice %222 {offsets = [0, 0], sizes = [2, 1], strides = [1, 1]} : vector<2x8xf32> to vector<2x1xf32>
    %224 = vector.broadcast %223 : vector<2x1xf32> to vector<2x8xf32>
    %225 = arith.mulf %224, %10 : vector<2x8xf32>
    %226 = vector.extract_strided_slice %222 {offsets = [0, 1], sizes = [2, 1], strides = [1, 1]} : vector<2x8xf32> to vector<2x1xf32>
    %227 = vector.broadcast %226 : vector<2x1xf32> to vector<2x8xf32>
    %228 = arith.mulf %227, %13 : vector<2x8xf32>
    %229 = vector.extract_strided_slice %222 {offsets = [0, 2], sizes = [2, 1], strides = [1, 1]} : vector<2x8xf32> to vector<2x1xf32>
    %230 = vector.broadcast %229 : vector<2x1xf32> to vector<2x8xf32>
    %231 = arith.mulf %230, %16 : vector<2x8xf32>
    %232 = vector.extract_strided_slice %222 {offsets = [0, 3], sizes = [2, 1], strides = [1, 1]} : vector<2x8xf32> to vector<2x1xf32>
    %233 = vector.broadcast %232 : vector<2x1xf32> to vector<2x8xf32>
    %234 = arith.mulf %233, %19 : vector<2x8xf32>
    %235 = vector.extract_strided_slice %222 {offsets = [0, 4], sizes = [2, 1], strides = [1, 1]} : vector<2x8xf32> to vector<2x1xf32>
    %236 = vector.broadcast %235 : vector<2x1xf32> to vector<2x8xf32>
    %237 = arith.mulf %236, %22 : vector<2x8xf32>
    %238 = vector.extract_strided_slice %222 {offsets = [0, 5], sizes = [2, 1], strides = [1, 1]} : vector<2x8xf32> to vector<2x1xf32>
    %239 = vector.broadcast %238 : vector<2x1xf32> to vector<2x8xf32>
    %240 = arith.mulf %239, %25 : vector<2x8xf32>
    %241 = vector.extract_strided_slice %222 {offsets = [0, 6], sizes = [2, 1], strides = [1, 1]} : vector<2x8xf32> to vector<2x1xf32>
    %242 = vector.broadcast %241 : vector<2x1xf32> to vector<2x8xf32>
    %243 = arith.mulf %242, %28 : vector<2x8xf32>
    %244 = vector.extract_strided_slice %222 {offsets = [0, 7], sizes = [2, 1], strides = [1, 1]} : vector<2x8xf32> to vector<2x1xf32>
    %245 = vector.broadcast %244 : vector<2x1xf32> to vector<2x8xf32>
    %246 = arith.mulf %245, %31 : vector<2x8xf32>
    %247 = arith.addf %225, %228 : vector<2x8xf32>
    %248 = arith.addf %231, %234 : vector<2x8xf32>
    %249 = arith.addf %237, %240 : vector<2x8xf32>
    %250 = arith.addf %243, %246 : vector<2x8xf32>
    %251 = arith.addf %247, %248 : vector<2x8xf32>
    %252 = arith.addf %249, %250 : vector<2x8xf32>
    %253 = arith.addf %251, %252 : vector<2x8xf32>
    %254 = arith.addf %111, %253 : vector<2x8xf32>
    %255 = math.tanh %254 : vector<2x8xf32>
    %256 = vector.extract_strided_slice %255 {offsets = [0, 0], sizes = [2, 1], strides = [1, 1]} : vector<2x8xf32> to vector<2x1xf32>
    %257 = vector.broadcast %256 : vector<2x1xf32> to vector<2x8xf32>
    %258 = arith.mulf %257, %10 : vector<2x8xf32>
    %259 = vector.extract_strided_slice %255 {offsets = [0, 1], sizes = [2, 1], strides = [1, 1]} : vector<2x8xf32> to vector<2x1xf32>
    %260 = vector.broadcast %259 : vector<2x1xf32> to vector<2x8xf32>
    %261 = arith.mulf %260, %13 : vector<2x8xf32>
    %262 = vector.extract_strided_slice %255 {offsets = [0, 2], sizes = [2, 1], strides = [1, 1]} : vector<2x8xf32> to vector<2x1xf32>
    %263 = vector.broadcast %262 : vector<2x1xf32> to vector<2x8xf32>
    %264 = arith.mulf %263, %16 : vector<2x8xf32>
    %265 = vector.extract_strided_slice %255 {offsets = [0, 3], sizes = [2, 1], strides = [1, 1]} : vector<2x8xf32> to vector<2x1xf32>
    %266 = vector.broadcast %265 : vector<2x1xf32> to vector<2x8xf32>
    %267 = arith.mulf %266, %19 : vector<2x8xf32>
    %268 = vector.extract_strided_slice %255 {offsets = [0, 4], sizes = [2, 1], strides = [1, 1]} : vector<2x8xf32> to vector<2x1xf32>
    %269 = vector.broadcast %268 : vector<2x1xf32> to vector<2x8xf32>
    %270 = arith.mulf %269, %22 : vector<2x8xf32>
    %271 = vector.extract_strided_slice %255 {offsets = [0, 5], sizes = [2, 1], strides = [1, 1]} : vector<2x8xf32> to vector<2x1xf32>
    %272 = vector.broadcast %271 : vector<2x1xf32> to vector<2x8xf32>
    %273 = arith.mulf %272, %25 : vector<2x8xf32>
    %274 = vector.extract_strided_slice %255 {offsets = [0, 6], sizes = [2, 1], strides = [1, 1]} : vector<2x8xf32> to vector<2x1xf32>
    %275 = vector.broadcast %274 : vector<2x1xf32> to vector<2x8xf32>
    %276 = arith.mulf %275, %28 : vector<2x8xf32>
    %277 = vector.extract_strided_slice %255 {offsets = [0, 7], sizes = [2, 1], strides = [1, 1]} : vector<2x8xf32> to vector<2x1xf32>
    %278 = vector.broadcast %277 : vector<2x1xf32> to vector<2x8xf32>
    %279 = arith.mulf %278, %31 : vector<2x8xf32>
    %280 = arith.addf %258, %261 : vector<2x8xf32>
    %281 = arith.addf %264, %267 : vector<2x8xf32>
    %282 = arith.addf %270, %273 : vector<2x8xf32>
    %283 = arith.addf %276, %279 : vector<2x8xf32>
    %284 = arith.addf %280, %281 : vector<2x8xf32>
    %285 = arith.addf %282, %283 : vector<2x8xf32>
    %286 = arith.addf %284, %285 : vector<2x8xf32>
    %287 = arith.addf %122, %286 : vector<2x8xf32>
    %288 = math.tanh %287 : vector<2x8xf32>
    %289 = vector.extract_strided_slice %288 {offsets = [0, 0], sizes = [2, 1], strides = [1, 1]} : vector<2x8xf32> to vector<2x1xf32>
    %290 = vector.broadcast %289 : vector<2x1xf32> to vector<2x8xf32>
    %291 = arith.mulf %290, %10 : vector<2x8xf32>
    %292 = vector.extract_strided_slice %288 {offsets = [0, 1], sizes = [2, 1], strides = [1, 1]} : vector<2x8xf32> to vector<2x1xf32>
    %293 = vector.broadcast %292 : vector<2x1xf32> to vector<2x8xf32>
    %294 = arith.mulf %293, %13 : vector<2x8xf32>
    %295 = vector.extract_strided_slice %288 {offsets = [0, 2], sizes = [2, 1], strides = [1, 1]} : vector<2x8xf32> to vector<2x1xf32>
    %296 = vector.broadcast %295 : vector<2x1xf32> to vector<2x8xf32>
    %297 = arith.mulf %296, %16 : vector<2x8xf32>
    %298 = vector.extract_strided_slice %288 {offsets = [0, 3], sizes = [2, 1], strides = [1, 1]} : vector<2x8xf32> to vector<2x1xf32>
    %299 = vector.broadcast %298 : vector<2x1xf32> to vector<2x8xf32>
    %300 = arith.mulf %299, %19 : vector<2x8xf32>
    %301 = vector.extract_strided_slice %288 {offsets = [0, 4], sizes = [2, 1], strides = [1, 1]} : vector<2x8xf32> to vector<2x1xf32>
    %302 = vector.broadcast %301 : vector<2x1xf32> to vector<2x8xf32>
    %303 = arith.mulf %302, %22 : vector<2x8xf32>
    %304 = vector.extract_strided_slice %288 {offsets = [0, 5], sizes = [2, 1], strides = [1, 1]} : vector<2x8xf32> to vector<2x1xf32>
    %305 = vector.broadcast %304 : vector<2x1xf32> to vector<2x8xf32>
    %306 = arith.mulf %305, %25 : vector<2x8xf32>
    %307 = vector.extract_strided_slice %288 {offsets = [0, 6], sizes = [2, 1], strides = [1, 1]} : vector<2x8xf32> to vector<2x1xf32>
    %308 = vector.broadcast %307 : vector<2x1xf32> to vector<2x8xf32>
    %309 = arith.mulf %308, %28 : vector<2x8xf32>
    %310 = vector.extract_strided_slice %288 {offsets = [0, 7], sizes = [2, 1], strides = [1, 1]} : vector<2x8xf32> to vector<2x1xf32>
    %311 = vector.broadcast %310 : vector<2x1xf32> to vector<2x8xf32>
    %312 = arith.mulf %311, %31 : vector<2x8xf32>
    %313 = arith.addf %291, %294 : vector<2x8xf32>
    %314 = arith.addf %297, %300 : vector<2x8xf32>
    %315 = arith.addf %303, %306 : vector<2x8xf32>
    %316 = arith.addf %309, %312 : vector<2x8xf32>
    %317 = arith.addf %313, %314 : vector<2x8xf32>
    %318 = arith.addf %315, %316 : vector<2x8xf32>
    %319 = arith.addf %317, %318 : vector<2x8xf32>
    %320 = arith.addf %133, %319 : vector<2x8xf32>
    %321 = math.tanh %320 : vector<2x8xf32>
    %322 = vector.extract_strided_slice %321 {offsets = [0, 0], sizes = [2, 1], strides = [1, 1]} : vector<2x8xf32> to vector<2x1xf32>
    %323 = vector.broadcast %322 : vector<2x1xf32> to vector<2x8xf32>
    %324 = arith.mulf %323, %10 : vector<2x8xf32>
    %325 = vector.extract_strided_slice %321 {offsets = [0, 1], sizes = [2, 1], strides = [1, 1]} : vector<2x8xf32> to vector<2x1xf32>
    %326 = vector.broadcast %325 : vector<2x1xf32> to vector<2x8xf32>
    %327 = arith.mulf %326, %13 : vector<2x8xf32>
    %328 = vector.extract_strided_slice %321 {offsets = [0, 2], sizes = [2, 1], strides = [1, 1]} : vector<2x8xf32> to vector<2x1xf32>
    %329 = vector.broadcast %328 : vector<2x1xf32> to vector<2x8xf32>
    %330 = arith.mulf %329, %16 : vector<2x8xf32>
    %331 = vector.extract_strided_slice %321 {offsets = [0, 3], sizes = [2, 1], strides = [1, 1]} : vector<2x8xf32> to vector<2x1xf32>
    %332 = vector.broadcast %331 : vector<2x1xf32> to vector<2x8xf32>
    %333 = arith.mulf %332, %19 : vector<2x8xf32>
    %334 = vector.extract_strided_slice %321 {offsets = [0, 4], sizes = [2, 1], strides = [1, 1]} : vector<2x8xf32> to vector<2x1xf32>
    %335 = vector.broadcast %334 : vector<2x1xf32> to vector<2x8xf32>
    %336 = arith.mulf %335, %22 : vector<2x8xf32>
    %337 = vector.extract_strided_slice %321 {offsets = [0, 5], sizes = [2, 1], strides = [1, 1]} : vector<2x8xf32> to vector<2x1xf32>
    %338 = vector.broadcast %337 : vector<2x1xf32> to vector<2x8xf32>
    %339 = arith.mulf %338, %25 : vector<2x8xf32>
    %340 = vector.extract_strided_slice %321 {offsets = [0, 6], sizes = [2, 1], strides = [1, 1]} : vector<2x8xf32> to vector<2x1xf32>
    %341 = vector.broadcast %340 : vector<2x1xf32> to vector<2x8xf32>
    %342 = arith.mulf %341, %28 : vector<2x8xf32>
    %343 = vector.extract_strided_slice %321 {offsets = [0, 7], sizes = [2, 1], strides = [1, 1]} : vector<2x8xf32> to vector<2x1xf32>
    %344 = vector.broadcast %343 : vector<2x1xf32> to vector<2x8xf32>
    %345 = arith.mulf %344, %31 : vector<2x8xf32>
    %346 = arith.addf %324, %327 : vector<2x8xf32>
    %347 = arith.addf %330, %333 : vector<2x8xf32>
    %348 = arith.addf %336, %339 : vector<2x8xf32>
    %349 = arith.addf %342, %345 : vector<2x8xf32>
    %350 = arith.addf %346, %347 : vector<2x8xf32>
    %351 = arith.addf %348, %349 : vector<2x8xf32>
    %352 = arith.addf %350, %351 : vector<2x8xf32>
    %353 = arith.addf %144, %352 : vector<2x8xf32>
    %354 = math.tanh %353 : vector<2x8xf32>
    %355 = vector.extract_strided_slice %354 {offsets = [0, 0], sizes = [2, 1], strides = [1, 1]} : vector<2x8xf32> to vector<2x1xf32>
    %356 = vector.broadcast %355 : vector<2x1xf32> to vector<2x8xf32>
    %357 = arith.mulf %356, %10 : vector<2x8xf32>
    %358 = vector.extract_strided_slice %354 {offsets = [0, 1], sizes = [2, 1], strides = [1, 1]} : vector<2x8xf32> to vector<2x1xf32>
    %359 = vector.broadcast %358 : vector<2x1xf32> to vector<2x8xf32>
    %360 = arith.mulf %359, %13 : vector<2x8xf32>
    %361 = vector.extract_strided_slice %354 {offsets = [0, 2], sizes = [2, 1], strides = [1, 1]} : vector<2x8xf32> to vector<2x1xf32>
    %362 = vector.broadcast %361 : vector<2x1xf32> to vector<2x8xf32>
    %363 = arith.mulf %362, %16 : vector<2x8xf32>
    %364 = vector.extract_strided_slice %354 {offsets = [0, 3], sizes = [2, 1], strides = [1, 1]} : vector<2x8xf32> to vector<2x1xf32>
    %365 = vector.broadcast %364 : vector<2x1xf32> to vector<2x8xf32>
    %366 = arith.mulf %365, %19 : vector<2x8xf32>
    %367 = vector.extract_strided_slice %354 {offsets = [0, 4], sizes = [2, 1], strides = [1, 1]} : vector<2x8xf32> to vector<2x1xf32>
    %368 = vector.broadcast %367 : vector<2x1xf32> to vector<2x8xf32>
    %369 = arith.mulf %368, %22 : vector<2x8xf32>
    %370 = vector.extract_strided_slice %354 {offsets = [0, 5], sizes = [2, 1], strides = [1, 1]} : vector<2x8xf32> to vector<2x1xf32>
    %371 = vector.broadcast %370 : vector<2x1xf32> to vector<2x8xf32>
    %372 = arith.mulf %371, %25 : vector<2x8xf32>
    %373 = vector.extract_strided_slice %354 {offsets = [0, 6], sizes = [2, 1], strides = [1, 1]} : vector<2x8xf32> to vector<2x1xf32>
    %374 = vector.broadcast %373 : vector<2x1xf32> to vector<2x8xf32>
    %375 = arith.mulf %374, %28 : vector<2x8xf32>
    %376 = vector.extract_strided_slice %354 {offsets = [0, 7], sizes = [2, 1], strides = [1, 1]} : vector<2x8xf32> to vector<2x1xf32>
    %377 = vector.broadcast %376 : vector<2x1xf32> to vector<2x8xf32>
    %378 = arith.mulf %377, %31 : vector<2x8xf32>
    %379 = arith.addf %357, %360 : vector<2x8xf32>
    %380 = arith.addf %363, %366 : vector<2x8xf32>
    %381 = arith.addf %369, %372 : vector<2x8xf32>
    %382 = arith.addf %375, %378 : vector<2x8xf32>
    %383 = arith.addf %379, %380 : vector<2x8xf32>
    %384 = arith.addf %381, %382 : vector<2x8xf32>
    %385 = arith.addf %383, %384 : vector<2x8xf32>
    %386 = arith.addf %155, %385 : vector<2x8xf32>
    %387 = math.tanh %386 : vector<2x8xf32>
    %388 = vector.extract_strided_slice %156 {offsets = [0, 0], sizes = [2, 1], strides = [1, 1]} : vector<2x8xf32> to vector<2x1xf32>
    %389 = vector.broadcast %388 : vector<2x1xf32> to vector<2x8xf32>
    %390 = arith.mulf %389, %34 : vector<2x8xf32>
    %391 = vector.extract_strided_slice %156 {offsets = [0, 1], sizes = [2, 1], strides = [1, 1]} : vector<2x8xf32> to vector<2x1xf32>
    %392 = vector.broadcast %391 : vector<2x1xf32> to vector<2x8xf32>
    %393 = arith.mulf %392, %37 : vector<2x8xf32>
    %394 = vector.extract_strided_slice %156 {offsets = [0, 2], sizes = [2, 1], strides = [1, 1]} : vector<2x8xf32> to vector<2x1xf32>
    %395 = vector.broadcast %394 : vector<2x1xf32> to vector<2x8xf32>
    %396 = arith.mulf %395, %40 : vector<2x8xf32>
    %397 = vector.extract_strided_slice %156 {offsets = [0, 3], sizes = [2, 1], strides = [1, 1]} : vector<2x8xf32> to vector<2x1xf32>
    %398 = vector.broadcast %397 : vector<2x1xf32> to vector<2x8xf32>
    %399 = arith.mulf %398, %43 : vector<2x8xf32>
    %400 = vector.extract_strided_slice %387 {offsets = [0, 4], sizes = [2, 1], strides = [1, 1]} : vector<2x8xf32> to vector<2x1xf32>
    %401 = vector.broadcast %400 : vector<2x1xf32> to vector<2x8xf32>
    %402 = arith.mulf %401, %46 : vector<2x8xf32>
    %403 = vector.extract_strided_slice %387 {offsets = [0, 5], sizes = [2, 1], strides = [1, 1]} : vector<2x8xf32> to vector<2x1xf32>
    %404 = vector.broadcast %403 : vector<2x1xf32> to vector<2x8xf32>
    %405 = arith.mulf %404, %49 : vector<2x8xf32>
    %406 = vector.extract_strided_slice %387 {offsets = [0, 6], sizes = [2, 1], strides = [1, 1]} : vector<2x8xf32> to vector<2x1xf32>
    %407 = vector.broadcast %406 : vector<2x1xf32> to vector<2x8xf32>
    %408 = arith.mulf %407, %52 : vector<2x8xf32>
    %409 = vector.extract_strided_slice %387 {offsets = [0, 7], sizes = [2, 1], strides = [1, 1]} : vector<2x8xf32> to vector<2x1xf32>
    %410 = vector.broadcast %409 : vector<2x1xf32> to vector<2x8xf32>
    %411 = arith.mulf %410, %55 : vector<2x8xf32>
    %412 = arith.addf %390, %393 : vector<2x8xf32>
    %413 = arith.addf %396, %399 : vector<2x8xf32>
    %414 = arith.addf %402, %405 : vector<2x8xf32>
    %415 = arith.addf %408, %411 : vector<2x8xf32>
    %416 = arith.addf %412, %413 : vector<2x8xf32>
    %417 = arith.addf %414, %415 : vector<2x8xf32>
    %418 = arith.addf %416, %417 : vector<2x8xf32>
    %419 = vector.broadcast %5 : vector<1x8xf32> to vector<2x8xf32>
    %420 = arith.addf %418, %419 : vector<2x8xf32>
    %421 = math.tanh %420 : vector<2x8xf32>
    %422 = vector.extract_strided_slice %421 {offsets = [0, 0], sizes = [2, 1], strides = [1, 1]} : vector<2x8xf32> to vector<2x1xf32>
    %423 = vector.broadcast %422 : vector<2x1xf32> to vector<2x8xf32>
    %424 = arith.mulf %423, %58 : vector<2x8xf32>
    %425 = vector.extract_strided_slice %421 {offsets = [0, 1], sizes = [2, 1], strides = [1, 1]} : vector<2x8xf32> to vector<2x1xf32>
    %426 = vector.broadcast %425 : vector<2x1xf32> to vector<2x8xf32>
    %427 = arith.mulf %426, %61 : vector<2x8xf32>
    %428 = vector.extract_strided_slice %421 {offsets = [0, 2], sizes = [2, 1], strides = [1, 1]} : vector<2x8xf32> to vector<2x1xf32>
    %429 = vector.broadcast %428 : vector<2x1xf32> to vector<2x8xf32>
    %430 = arith.mulf %429, %64 : vector<2x8xf32>
    %431 = vector.extract_strided_slice %421 {offsets = [0, 3], sizes = [2, 1], strides = [1, 1]} : vector<2x8xf32> to vector<2x1xf32>
    %432 = vector.broadcast %431 : vector<2x1xf32> to vector<2x8xf32>
    %433 = arith.mulf %432, %67 : vector<2x8xf32>
    %434 = arith.addf %424, %427 : vector<2x8xf32>
    %435 = arith.addf %430, %433 : vector<2x8xf32>
    %436 = arith.addf %434, %435 : vector<2x8xf32>
    %437 = vector.extract_strided_slice %189 {offsets = [0, 0], sizes = [2, 1], strides = [1, 1]} : vector<2x8xf32> to vector<2x1xf32>
    %438 = vector.broadcast %437 : vector<2x1xf32> to vector<2x8xf32>
    %439 = arith.mulf %438, %34 : vector<2x8xf32>
    %440 = vector.extract_strided_slice %189 {offsets = [0, 1], sizes = [2, 1], strides = [1, 1]} : vector<2x8xf32> to vector<2x1xf32>
    %441 = vector.broadcast %440 : vector<2x1xf32> to vector<2x8xf32>
    %442 = arith.mulf %441, %37 : vector<2x8xf32>
    %443 = vector.extract_strided_slice %189 {offsets = [0, 2], sizes = [2, 1], strides = [1, 1]} : vector<2x8xf32> to vector<2x1xf32>
    %444 = vector.broadcast %443 : vector<2x1xf32> to vector<2x8xf32>
    %445 = arith.mulf %444, %40 : vector<2x8xf32>
    %446 = vector.extract_strided_slice %189 {offsets = [0, 3], sizes = [2, 1], strides = [1, 1]} : vector<2x8xf32> to vector<2x1xf32>
    %447 = vector.broadcast %446 : vector<2x1xf32> to vector<2x8xf32>
    %448 = arith.mulf %447, %43 : vector<2x8xf32>
    %449 = vector.extract_strided_slice %354 {offsets = [0, 4], sizes = [2, 1], strides = [1, 1]} : vector<2x8xf32> to vector<2x1xf32>
    %450 = vector.broadcast %449 : vector<2x1xf32> to vector<2x8xf32>
    %451 = arith.mulf %450, %46 : vector<2x8xf32>
    %452 = vector.extract_strided_slice %354 {offsets = [0, 5], sizes = [2, 1], strides = [1, 1]} : vector<2x8xf32> to vector<2x1xf32>
    %453 = vector.broadcast %452 : vector<2x1xf32> to vector<2x8xf32>
    %454 = arith.mulf %453, %49 : vector<2x8xf32>
    %455 = vector.extract_strided_slice %354 {offsets = [0, 6], sizes = [2, 1], strides = [1, 1]} : vector<2x8xf32> to vector<2x1xf32>
    %456 = vector.broadcast %455 : vector<2x1xf32> to vector<2x8xf32>
    %457 = arith.mulf %456, %52 : vector<2x8xf32>
    %458 = vector.extract_strided_slice %354 {offsets = [0, 7], sizes = [2, 1], strides = [1, 1]} : vector<2x8xf32> to vector<2x1xf32>
    %459 = vector.broadcast %458 : vector<2x1xf32> to vector<2x8xf32>
    %460 = arith.mulf %459, %55 : vector<2x8xf32>
    %461 = arith.addf %439, %442 : vector<2x8xf32>
    %462 = arith.addf %445, %448 : vector<2x8xf32>
    %463 = arith.addf %451, %454 : vector<2x8xf32>
    %464 = arith.addf %457, %460 : vector<2x8xf32>
    %465 = arith.addf %461, %462 : vector<2x8xf32>
    %466 = arith.addf %463, %464 : vector<2x8xf32>
    %467 = arith.addf %465, %466 : vector<2x8xf32>
    %468 = vector.broadcast %5 : vector<1x8xf32> to vector<2x8xf32>
    %469 = arith.addf %467, %468 : vector<2x8xf32>
    %470 = arith.addf %469, %436 : vector<2x8xf32>
    %471 = math.tanh %470 : vector<2x8xf32>
    %472 = vector.extract_strided_slice %471 {offsets = [0, 0], sizes = [2, 1], strides = [1, 1]} : vector<2x8xf32> to vector<2x1xf32>
    %473 = vector.broadcast %472 : vector<2x1xf32> to vector<2x8xf32>
    %474 = arith.mulf %473, %58 : vector<2x8xf32>
    %475 = vector.extract_strided_slice %471 {offsets = [0, 1], sizes = [2, 1], strides = [1, 1]} : vector<2x8xf32> to vector<2x1xf32>
    %476 = vector.broadcast %475 : vector<2x1xf32> to vector<2x8xf32>
    %477 = arith.mulf %476, %61 : vector<2x8xf32>
    %478 = vector.extract_strided_slice %471 {offsets = [0, 2], sizes = [2, 1], strides = [1, 1]} : vector<2x8xf32> to vector<2x1xf32>
    %479 = vector.broadcast %478 : vector<2x1xf32> to vector<2x8xf32>
    %480 = arith.mulf %479, %64 : vector<2x8xf32>
    %481 = vector.extract_strided_slice %471 {offsets = [0, 3], sizes = [2, 1], strides = [1, 1]} : vector<2x8xf32> to vector<2x1xf32>
    %482 = vector.broadcast %481 : vector<2x1xf32> to vector<2x8xf32>
    %483 = arith.mulf %482, %67 : vector<2x8xf32>
    %484 = arith.addf %474, %477 : vector<2x8xf32>
    %485 = arith.addf %480, %483 : vector<2x8xf32>
    %486 = arith.addf %484, %485 : vector<2x8xf32>
    %487 = vector.extract_strided_slice %222 {offsets = [0, 0], sizes = [2, 1], strides = [1, 1]} : vector<2x8xf32> to vector<2x1xf32>
    %488 = vector.broadcast %487 : vector<2x1xf32> to vector<2x8xf32>
    %489 = arith.mulf %488, %34 : vector<2x8xf32>
    %490 = vector.extract_strided_slice %222 {offsets = [0, 1], sizes = [2, 1], strides = [1, 1]} : vector<2x8xf32> to vector<2x1xf32>
    %491 = vector.broadcast %490 : vector<2x1xf32> to vector<2x8xf32>
    %492 = arith.mulf %491, %37 : vector<2x8xf32>
    %493 = vector.extract_strided_slice %222 {offsets = [0, 2], sizes = [2, 1], strides = [1, 1]} : vector<2x8xf32> to vector<2x1xf32>
    %494 = vector.broadcast %493 : vector<2x1xf32> to vector<2x8xf32>
    %495 = arith.mulf %494, %40 : vector<2x8xf32>
    %496 = vector.extract_strided_slice %222 {offsets = [0, 3], sizes = [2, 1], strides = [1, 1]} : vector<2x8xf32> to vector<2x1xf32>
    %497 = vector.broadcast %496 : vector<2x1xf32> to vector<2x8xf32>
    %498 = arith.mulf %497, %43 : vector<2x8xf32>
    %499 = vector.extract_strided_slice %321 {offsets = [0, 4], sizes = [2, 1], strides = [1, 1]} : vector<2x8xf32> to vector<2x1xf32>
    %500 = vector.broadcast %499 : vector<2x1xf32> to vector<2x8xf32>
    %501 = arith.mulf %500, %46 : vector<2x8xf32>
    %502 = vector.extract_strided_slice %321 {offsets = [0, 5], sizes = [2, 1], strides = [1, 1]} : vector<2x8xf32> to vector<2x1xf32>
    %503 = vector.broadcast %502 : vector<2x1xf32> to vector<2x8xf32>
    %504 = arith.mulf %503, %49 : vector<2x8xf32>
    %505 = vector.extract_strided_slice %321 {offsets = [0, 6], sizes = [2, 1], strides = [1, 1]} : vector<2x8xf32> to vector<2x1xf32>
    %506 = vector.broadcast %505 : vector<2x1xf32> to vector<2x8xf32>
    %507 = arith.mulf %506, %52 : vector<2x8xf32>
    %508 = vector.extract_strided_slice %321 {offsets = [0, 7], sizes = [2, 1], strides = [1, 1]} : vector<2x8xf32> to vector<2x1xf32>
    %509 = vector.broadcast %508 : vector<2x1xf32> to vector<2x8xf32>
    %510 = arith.mulf %509, %55 : vector<2x8xf32>
    %511 = arith.addf %489, %492 : vector<2x8xf32>
    %512 = arith.addf %495, %498 : vector<2x8xf32>
    %513 = arith.addf %501, %504 : vector<2x8xf32>
    %514 = arith.addf %507, %510 : vector<2x8xf32>
    %515 = arith.addf %511, %512 : vector<2x8xf32>
    %516 = arith.addf %513, %514 : vector<2x8xf32>
    %517 = arith.addf %515, %516 : vector<2x8xf32>
    %518 = vector.broadcast %5 : vector<1x8xf32> to vector<2x8xf32>
    %519 = arith.addf %517, %518 : vector<2x8xf32>
    %520 = arith.addf %519, %486 : vector<2x8xf32>
    %521 = math.tanh %520 : vector<2x8xf32>
    %522 = vector.extract_strided_slice %521 {offsets = [0, 0], sizes = [2, 1], strides = [1, 1]} : vector<2x8xf32> to vector<2x1xf32>
    %523 = vector.broadcast %522 : vector<2x1xf32> to vector<2x8xf32>
    %524 = arith.mulf %523, %58 : vector<2x8xf32>
    %525 = vector.extract_strided_slice %521 {offsets = [0, 1], sizes = [2, 1], strides = [1, 1]} : vector<2x8xf32> to vector<2x1xf32>
    %526 = vector.broadcast %525 : vector<2x1xf32> to vector<2x8xf32>
    %527 = arith.mulf %526, %61 : vector<2x8xf32>
    %528 = vector.extract_strided_slice %521 {offsets = [0, 2], sizes = [2, 1], strides = [1, 1]} : vector<2x8xf32> to vector<2x1xf32>
    %529 = vector.broadcast %528 : vector<2x1xf32> to vector<2x8xf32>
    %530 = arith.mulf %529, %64 : vector<2x8xf32>
    %531 = vector.extract_strided_slice %521 {offsets = [0, 3], sizes = [2, 1], strides = [1, 1]} : vector<2x8xf32> to vector<2x1xf32>
    %532 = vector.broadcast %531 : vector<2x1xf32> to vector<2x8xf32>
    %533 = arith.mulf %532, %67 : vector<2x8xf32>
    %534 = arith.addf %524, %527 : vector<2x8xf32>
    %535 = arith.addf %530, %533 : vector<2x8xf32>
    %536 = arith.addf %534, %535 : vector<2x8xf32>
    %537 = vector.extract_strided_slice %255 {offsets = [0, 0], sizes = [2, 1], strides = [1, 1]} : vector<2x8xf32> to vector<2x1xf32>
    %538 = vector.broadcast %537 : vector<2x1xf32> to vector<2x8xf32>
    %539 = arith.mulf %538, %34 : vector<2x8xf32>
    %540 = vector.extract_strided_slice %255 {offsets = [0, 1], sizes = [2, 1], strides = [1, 1]} : vector<2x8xf32> to vector<2x1xf32>
    %541 = vector.broadcast %540 : vector<2x1xf32> to vector<2x8xf32>
    %542 = arith.mulf %541, %37 : vector<2x8xf32>
    %543 = vector.extract_strided_slice %255 {offsets = [0, 2], sizes = [2, 1], strides = [1, 1]} : vector<2x8xf32> to vector<2x1xf32>
    %544 = vector.broadcast %543 : vector<2x1xf32> to vector<2x8xf32>
    %545 = arith.mulf %544, %40 : vector<2x8xf32>
    %546 = vector.extract_strided_slice %255 {offsets = [0, 3], sizes = [2, 1], strides = [1, 1]} : vector<2x8xf32> to vector<2x1xf32>
    %547 = vector.broadcast %546 : vector<2x1xf32> to vector<2x8xf32>
    %548 = arith.mulf %547, %43 : vector<2x8xf32>
    %549 = vector.extract_strided_slice %288 {offsets = [0, 4], sizes = [2, 1], strides = [1, 1]} : vector<2x8xf32> to vector<2x1xf32>
    %550 = vector.broadcast %549 : vector<2x1xf32> to vector<2x8xf32>
    %551 = arith.mulf %550, %46 : vector<2x8xf32>
    %552 = vector.extract_strided_slice %288 {offsets = [0, 5], sizes = [2, 1], strides = [1, 1]} : vector<2x8xf32> to vector<2x1xf32>
    %553 = vector.broadcast %552 : vector<2x1xf32> to vector<2x8xf32>
    %554 = arith.mulf %553, %49 : vector<2x8xf32>
    %555 = vector.extract_strided_slice %288 {offsets = [0, 6], sizes = [2, 1], strides = [1, 1]} : vector<2x8xf32> to vector<2x1xf32>
    %556 = vector.broadcast %555 : vector<2x1xf32> to vector<2x8xf32>
    %557 = arith.mulf %556, %52 : vector<2x8xf32>
    %558 = vector.extract_strided_slice %288 {offsets = [0, 7], sizes = [2, 1], strides = [1, 1]} : vector<2x8xf32> to vector<2x1xf32>
    %559 = vector.broadcast %558 : vector<2x1xf32> to vector<2x8xf32>
    %560 = arith.mulf %559, %55 : vector<2x8xf32>
    %561 = arith.addf %539, %542 : vector<2x8xf32>
    %562 = arith.addf %545, %548 : vector<2x8xf32>
    %563 = arith.addf %551, %554 : vector<2x8xf32>
    %564 = arith.addf %557, %560 : vector<2x8xf32>
    %565 = arith.addf %561, %562 : vector<2x8xf32>
    %566 = arith.addf %563, %564 : vector<2x8xf32>
    %567 = arith.addf %565, %566 : vector<2x8xf32>
    %568 = vector.broadcast %5 : vector<1x8xf32> to vector<2x8xf32>
    %569 = arith.addf %567, %568 : vector<2x8xf32>
    %570 = arith.addf %569, %536 : vector<2x8xf32>
    %571 = math.tanh %570 : vector<2x8xf32>
    %572 = vector.extract_strided_slice %571 {offsets = [0, 0], sizes = [2, 1], strides = [1, 1]} : vector<2x8xf32> to vector<2x1xf32>
    %573 = vector.broadcast %572 : vector<2x1xf32> to vector<2x8xf32>
    %574 = arith.mulf %573, %58 : vector<2x8xf32>
    %575 = vector.extract_strided_slice %571 {offsets = [0, 1], sizes = [2, 1], strides = [1, 1]} : vector<2x8xf32> to vector<2x1xf32>
    %576 = vector.broadcast %575 : vector<2x1xf32> to vector<2x8xf32>
    %577 = arith.mulf %576, %61 : vector<2x8xf32>
    %578 = vector.extract_strided_slice %571 {offsets = [0, 2], sizes = [2, 1], strides = [1, 1]} : vector<2x8xf32> to vector<2x1xf32>
    %579 = vector.broadcast %578 : vector<2x1xf32> to vector<2x8xf32>
    %580 = arith.mulf %579, %64 : vector<2x8xf32>
    %581 = vector.extract_strided_slice %571 {offsets = [0, 3], sizes = [2, 1], strides = [1, 1]} : vector<2x8xf32> to vector<2x1xf32>
    %582 = vector.broadcast %581 : vector<2x1xf32> to vector<2x8xf32>
    %583 = arith.mulf %582, %67 : vector<2x8xf32>
    %584 = arith.addf %574, %577 : vector<2x8xf32>
    %585 = arith.addf %580, %583 : vector<2x8xf32>
    %586 = arith.addf %584, %585 : vector<2x8xf32>
    %587 = vector.extract_strided_slice %288 {offsets = [0, 0], sizes = [2, 1], strides = [1, 1]} : vector<2x8xf32> to vector<2x1xf32>
    %588 = vector.broadcast %587 : vector<2x1xf32> to vector<2x8xf32>
    %589 = arith.mulf %588, %34 : vector<2x8xf32>
    %590 = vector.extract_strided_slice %288 {offsets = [0, 1], sizes = [2, 1], strides = [1, 1]} : vector<2x8xf32> to vector<2x1xf32>
    %591 = vector.broadcast %590 : vector<2x1xf32> to vector<2x8xf32>
    %592 = arith.mulf %591, %37 : vector<2x8xf32>
    %593 = vector.extract_strided_slice %288 {offsets = [0, 2], sizes = [2, 1], strides = [1, 1]} : vector<2x8xf32> to vector<2x1xf32>
    %594 = vector.broadcast %593 : vector<2x1xf32> to vector<2x8xf32>
    %595 = arith.mulf %594, %40 : vector<2x8xf32>
    %596 = vector.extract_strided_slice %288 {offsets = [0, 3], sizes = [2, 1], strides = [1, 1]} : vector<2x8xf32> to vector<2x1xf32>
    %597 = vector.broadcast %596 : vector<2x1xf32> to vector<2x8xf32>
    %598 = arith.mulf %597, %43 : vector<2x8xf32>
    %599 = vector.extract_strided_slice %255 {offsets = [0, 4], sizes = [2, 1], strides = [1, 1]} : vector<2x8xf32> to vector<2x1xf32>
    %600 = vector.broadcast %599 : vector<2x1xf32> to vector<2x8xf32>
    %601 = arith.mulf %600, %46 : vector<2x8xf32>
    %602 = vector.extract_strided_slice %255 {offsets = [0, 5], sizes = [2, 1], strides = [1, 1]} : vector<2x8xf32> to vector<2x1xf32>
    %603 = vector.broadcast %602 : vector<2x1xf32> to vector<2x8xf32>
    %604 = arith.mulf %603, %49 : vector<2x8xf32>
    %605 = vector.extract_strided_slice %255 {offsets = [0, 6], sizes = [2, 1], strides = [1, 1]} : vector<2x8xf32> to vector<2x1xf32>
    %606 = vector.broadcast %605 : vector<2x1xf32> to vector<2x8xf32>
    %607 = arith.mulf %606, %52 : vector<2x8xf32>
    %608 = vector.extract_strided_slice %255 {offsets = [0, 7], sizes = [2, 1], strides = [1, 1]} : vector<2x8xf32> to vector<2x1xf32>
    %609 = vector.broadcast %608 : vector<2x1xf32> to vector<2x8xf32>
    %610 = arith.mulf %609, %55 : vector<2x8xf32>
    %611 = arith.addf %589, %592 : vector<2x8xf32>
    %612 = arith.addf %595, %598 : vector<2x8xf32>
    %613 = arith.addf %601, %604 : vector<2x8xf32>
    %614 = arith.addf %607, %610 : vector<2x8xf32>
    %615 = arith.addf %611, %612 : vector<2x8xf32>
    %616 = arith.addf %613, %614 : vector<2x8xf32>
    %617 = arith.addf %615, %616 : vector<2x8xf32>
    %618 = vector.broadcast %5 : vector<1x8xf32> to vector<2x8xf32>
    %619 = arith.addf %617, %618 : vector<2x8xf32>
    %620 = arith.addf %619, %586 : vector<2x8xf32>
    %621 = math.tanh %620 : vector<2x8xf32>
    %622 = vector.extract_strided_slice %621 {offsets = [0, 0], sizes = [2, 1], strides = [1, 1]} : vector<2x8xf32> to vector<2x1xf32>
    %623 = vector.broadcast %622 : vector<2x1xf32> to vector<2x8xf32>
    %624 = arith.mulf %623, %58 : vector<2x8xf32>
    %625 = vector.extract_strided_slice %621 {offsets = [0, 1], sizes = [2, 1], strides = [1, 1]} : vector<2x8xf32> to vector<2x1xf32>
    %626 = vector.broadcast %625 : vector<2x1xf32> to vector<2x8xf32>
    %627 = arith.mulf %626, %61 : vector<2x8xf32>
    %628 = vector.extract_strided_slice %621 {offsets = [0, 2], sizes = [2, 1], strides = [1, 1]} : vector<2x8xf32> to vector<2x1xf32>
    %629 = vector.broadcast %628 : vector<2x1xf32> to vector<2x8xf32>
    %630 = arith.mulf %629, %64 : vector<2x8xf32>
    %631 = vector.extract_strided_slice %621 {offsets = [0, 3], sizes = [2, 1], strides = [1, 1]} : vector<2x8xf32> to vector<2x1xf32>
    %632 = vector.broadcast %631 : vector<2x1xf32> to vector<2x8xf32>
    %633 = arith.mulf %632, %67 : vector<2x8xf32>
    %634 = arith.addf %624, %627 : vector<2x8xf32>
    %635 = arith.addf %630, %633 : vector<2x8xf32>
    %636 = arith.addf %634, %635 : vector<2x8xf32>
    %637 = vector.extract_strided_slice %321 {offsets = [0, 0], sizes = [2, 1], strides = [1, 1]} : vector<2x8xf32> to vector<2x1xf32>
    %638 = vector.broadcast %637 : vector<2x1xf32> to vector<2x8xf32>
    %639 = arith.mulf %638, %34 : vector<2x8xf32>
    %640 = vector.extract_strided_slice %321 {offsets = [0, 1], sizes = [2, 1], strides = [1, 1]} : vector<2x8xf32> to vector<2x1xf32>
    %641 = vector.broadcast %640 : vector<2x1xf32> to vector<2x8xf32>
    %642 = arith.mulf %641, %37 : vector<2x8xf32>
    %643 = vector.extract_strided_slice %321 {offsets = [0, 2], sizes = [2, 1], strides = [1, 1]} : vector<2x8xf32> to vector<2x1xf32>
    %644 = vector.broadcast %643 : vector<2x1xf32> to vector<2x8xf32>
    %645 = arith.mulf %644, %40 : vector<2x8xf32>
    %646 = vector.extract_strided_slice %321 {offsets = [0, 3], sizes = [2, 1], strides = [1, 1]} : vector<2x8xf32> to vector<2x1xf32>
    %647 = vector.broadcast %646 : vector<2x1xf32> to vector<2x8xf32>
    %648 = arith.mulf %647, %43 : vector<2x8xf32>
    %649 = vector.extract_strided_slice %222 {offsets = [0, 4], sizes = [2, 1], strides = [1, 1]} : vector<2x8xf32> to vector<2x1xf32>
    %650 = vector.broadcast %649 : vector<2x1xf32> to vector<2x8xf32>
    %651 = arith.mulf %650, %46 : vector<2x8xf32>
    %652 = vector.extract_strided_slice %222 {offsets = [0, 5], sizes = [2, 1], strides = [1, 1]} : vector<2x8xf32> to vector<2x1xf32>
    %653 = vector.broadcast %652 : vector<2x1xf32> to vector<2x8xf32>
    %654 = arith.mulf %653, %49 : vector<2x8xf32>
    %655 = vector.extract_strided_slice %222 {offsets = [0, 6], sizes = [2, 1], strides = [1, 1]} : vector<2x8xf32> to vector<2x1xf32>
    %656 = vector.broadcast %655 : vector<2x1xf32> to vector<2x8xf32>
    %657 = arith.mulf %656, %52 : vector<2x8xf32>
    %658 = vector.extract_strided_slice %222 {offsets = [0, 7], sizes = [2, 1], strides = [1, 1]} : vector<2x8xf32> to vector<2x1xf32>
    %659 = vector.broadcast %658 : vector<2x1xf32> to vector<2x8xf32>
    %660 = arith.mulf %659, %55 : vector<2x8xf32>
    %661 = arith.addf %639, %642 : vector<2x8xf32>
    %662 = arith.addf %645, %648 : vector<2x8xf32>
    %663 = arith.addf %651, %654 : vector<2x8xf32>
    %664 = arith.addf %657, %660 : vector<2x8xf32>
    %665 = arith.addf %661, %662 : vector<2x8xf32>
    %666 = arith.addf %663, %664 : vector<2x8xf32>
    %667 = arith.addf %665, %666 : vector<2x8xf32>
    %668 = vector.broadcast %5 : vector<1x8xf32> to vector<2x8xf32>
    %669 = arith.addf %667, %668 : vector<2x8xf32>
    %670 = arith.addf %669, %636 : vector<2x8xf32>
    %671 = math.tanh %670 : vector<2x8xf32>
    %672 = vector.extract_strided_slice %671 {offsets = [0, 0], sizes = [2, 1], strides = [1, 1]} : vector<2x8xf32> to vector<2x1xf32>
    %673 = vector.broadcast %672 : vector<2x1xf32> to vector<2x8xf32>
    %674 = arith.mulf %673, %58 : vector<2x8xf32>
    %675 = vector.extract_strided_slice %671 {offsets = [0, 1], sizes = [2, 1], strides = [1, 1]} : vector<2x8xf32> to vector<2x1xf32>
    %676 = vector.broadcast %675 : vector<2x1xf32> to vector<2x8xf32>
    %677 = arith.mulf %676, %61 : vector<2x8xf32>
    %678 = vector.extract_strided_slice %671 {offsets = [0, 2], sizes = [2, 1], strides = [1, 1]} : vector<2x8xf32> to vector<2x1xf32>
    %679 = vector.broadcast %678 : vector<2x1xf32> to vector<2x8xf32>
    %680 = arith.mulf %679, %64 : vector<2x8xf32>
    %681 = vector.extract_strided_slice %671 {offsets = [0, 3], sizes = [2, 1], strides = [1, 1]} : vector<2x8xf32> to vector<2x1xf32>
    %682 = vector.broadcast %681 : vector<2x1xf32> to vector<2x8xf32>
    %683 = arith.mulf %682, %67 : vector<2x8xf32>
    %684 = arith.addf %674, %677 : vector<2x8xf32>
    %685 = arith.addf %680, %683 : vector<2x8xf32>
    %686 = arith.addf %684, %685 : vector<2x8xf32>
    %687 = vector.extract_strided_slice %354 {offsets = [0, 0], sizes = [2, 1], strides = [1, 1]} : vector<2x8xf32> to vector<2x1xf32>
    %688 = vector.broadcast %687 : vector<2x1xf32> to vector<2x8xf32>
    %689 = arith.mulf %688, %34 : vector<2x8xf32>
    %690 = vector.extract_strided_slice %354 {offsets = [0, 1], sizes = [2, 1], strides = [1, 1]} : vector<2x8xf32> to vector<2x1xf32>
    %691 = vector.broadcast %690 : vector<2x1xf32> to vector<2x8xf32>
    %692 = arith.mulf %691, %37 : vector<2x8xf32>
    %693 = vector.extract_strided_slice %354 {offsets = [0, 2], sizes = [2, 1], strides = [1, 1]} : vector<2x8xf32> to vector<2x1xf32>
    %694 = vector.broadcast %693 : vector<2x1xf32> to vector<2x8xf32>
    %695 = arith.mulf %694, %40 : vector<2x8xf32>
    %696 = vector.extract_strided_slice %354 {offsets = [0, 3], sizes = [2, 1], strides = [1, 1]} : vector<2x8xf32> to vector<2x1xf32>
    %697 = vector.broadcast %696 : vector<2x1xf32> to vector<2x8xf32>
    %698 = arith.mulf %697, %43 : vector<2x8xf32>
    %699 = vector.extract_strided_slice %189 {offsets = [0, 4], sizes = [2, 1], strides = [1, 1]} : vector<2x8xf32> to vector<2x1xf32>
    %700 = vector.broadcast %699 : vector<2x1xf32> to vector<2x8xf32>
    %701 = arith.mulf %700, %46 : vector<2x8xf32>
    %702 = vector.extract_strided_slice %189 {offsets = [0, 5], sizes = [2, 1], strides = [1, 1]} : vector<2x8xf32> to vector<2x1xf32>
    %703 = vector.broadcast %702 : vector<2x1xf32> to vector<2x8xf32>
    %704 = arith.mulf %703, %49 : vector<2x8xf32>
    %705 = vector.extract_strided_slice %189 {offsets = [0, 6], sizes = [2, 1], strides = [1, 1]} : vector<2x8xf32> to vector<2x1xf32>
    %706 = vector.broadcast %705 : vector<2x1xf32> to vector<2x8xf32>
    %707 = arith.mulf %706, %52 : vector<2x8xf32>
    %708 = vector.extract_strided_slice %189 {offsets = [0, 7], sizes = [2, 1], strides = [1, 1]} : vector<2x8xf32> to vector<2x1xf32>
    %709 = vector.broadcast %708 : vector<2x1xf32> to vector<2x8xf32>
    %710 = arith.mulf %709, %55 : vector<2x8xf32>
    %711 = arith.addf %689, %692 : vector<2x8xf32>
    %712 = arith.addf %695, %698 : vector<2x8xf32>
    %713 = arith.addf %701, %704 : vector<2x8xf32>
    %714 = arith.addf %707, %710 : vector<2x8xf32>
    %715 = arith.addf %711, %712 : vector<2x8xf32>
    %716 = arith.addf %713, %714 : vector<2x8xf32>
    %717 = arith.addf %715, %716 : vector<2x8xf32>
    %718 = vector.broadcast %5 : vector<1x8xf32> to vector<2x8xf32>
    %719 = arith.addf %717, %718 : vector<2x8xf32>
    %720 = arith.addf %719, %686 : vector<2x8xf32>
    %721 = math.tanh %720 : vector<2x8xf32>
    %722 = vector.extract_strided_slice %721 {offsets = [0, 0], sizes = [2, 1], strides = [1, 1]} : vector<2x8xf32> to vector<2x1xf32>
    %723 = vector.broadcast %722 : vector<2x1xf32> to vector<2x8xf32>
    %724 = arith.mulf %723, %58 : vector<2x8xf32>
    %725 = vector.extract_strided_slice %721 {offsets = [0, 1], sizes = [2, 1], strides = [1, 1]} : vector<2x8xf32> to vector<2x1xf32>
    %726 = vector.broadcast %725 : vector<2x1xf32> to vector<2x8xf32>
    %727 = arith.mulf %726, %61 : vector<2x8xf32>
    %728 = vector.extract_strided_slice %721 {offsets = [0, 2], sizes = [2, 1], strides = [1, 1]} : vector<2x8xf32> to vector<2x1xf32>
    %729 = vector.broadcast %728 : vector<2x1xf32> to vector<2x8xf32>
    %730 = arith.mulf %729, %64 : vector<2x8xf32>
    %731 = vector.extract_strided_slice %721 {offsets = [0, 3], sizes = [2, 1], strides = [1, 1]} : vector<2x8xf32> to vector<2x1xf32>
    %732 = vector.broadcast %731 : vector<2x1xf32> to vector<2x8xf32>
    %733 = arith.mulf %732, %67 : vector<2x8xf32>
    %734 = arith.addf %724, %727 : vector<2x8xf32>
    %735 = arith.addf %730, %733 : vector<2x8xf32>
    %736 = arith.addf %734, %735 : vector<2x8xf32>
    %737 = vector.extract_strided_slice %387 {offsets = [0, 0], sizes = [2, 1], strides = [1, 1]} : vector<2x8xf32> to vector<2x1xf32>
    %738 = vector.broadcast %737 : vector<2x1xf32> to vector<2x8xf32>
    %739 = arith.mulf %738, %34 : vector<2x8xf32>
    %740 = vector.extract_strided_slice %387 {offsets = [0, 1], sizes = [2, 1], strides = [1, 1]} : vector<2x8xf32> to vector<2x1xf32>
    %741 = vector.broadcast %740 : vector<2x1xf32> to vector<2x8xf32>
    %742 = arith.mulf %741, %37 : vector<2x8xf32>
    %743 = vector.extract_strided_slice %387 {offsets = [0, 2], sizes = [2, 1], strides = [1, 1]} : vector<2x8xf32> to vector<2x1xf32>
    %744 = vector.broadcast %743 : vector<2x1xf32> to vector<2x8xf32>
    %745 = arith.mulf %744, %40 : vector<2x8xf32>
    %746 = vector.extract_strided_slice %387 {offsets = [0, 3], sizes = [2, 1], strides = [1, 1]} : vector<2x8xf32> to vector<2x1xf32>
    %747 = vector.broadcast %746 : vector<2x1xf32> to vector<2x8xf32>
    %748 = arith.mulf %747, %43 : vector<2x8xf32>
    %749 = vector.extract_strided_slice %156 {offsets = [0, 4], sizes = [2, 1], strides = [1, 1]} : vector<2x8xf32> to vector<2x1xf32>
    %750 = vector.broadcast %749 : vector<2x1xf32> to vector<2x8xf32>
    %751 = arith.mulf %750, %46 : vector<2x8xf32>
    %752 = vector.extract_strided_slice %156 {offsets = [0, 5], sizes = [2, 1], strides = [1, 1]} : vector<2x8xf32> to vector<2x1xf32>
    %753 = vector.broadcast %752 : vector<2x1xf32> to vector<2x8xf32>
    %754 = arith.mulf %753, %49 : vector<2x8xf32>
    %755 = vector.extract_strided_slice %156 {offsets = [0, 6], sizes = [2, 1], strides = [1, 1]} : vector<2x8xf32> to vector<2x1xf32>
    %756 = vector.broadcast %755 : vector<2x1xf32> to vector<2x8xf32>
    %757 = arith.mulf %756, %52 : vector<2x8xf32>
    %758 = vector.extract_strided_slice %156 {offsets = [0, 7], sizes = [2, 1], strides = [1, 1]} : vector<2x8xf32> to vector<2x1xf32>
    %759 = vector.broadcast %758 : vector<2x1xf32> to vector<2x8xf32>
    %760 = arith.mulf %759, %55 : vector<2x8xf32>
    %761 = arith.addf %739, %742 : vector<2x8xf32>
    %762 = arith.addf %745, %748 : vector<2x8xf32>
    %763 = arith.addf %751, %754 : vector<2x8xf32>
    %764 = arith.addf %757, %760 : vector<2x8xf32>
    %765 = arith.addf %761, %762 : vector<2x8xf32>
    %766 = arith.addf %763, %764 : vector<2x8xf32>
    %767 = arith.addf %765, %766 : vector<2x8xf32>
    %768 = vector.broadcast %5 : vector<1x8xf32> to vector<2x8xf32>
    %769 = arith.addf %767, %768 : vector<2x8xf32>
    %770 = arith.addf %769, %736 : vector<2x8xf32>
    %771 = math.tanh %770 : vector<2x8xf32>
    %772 = vector.broadcast %6 : vector<1x8xf32> to vector<2x8xf32>
    %773 = arith.mulf %771, %772 : vector<2x8xf32>
    %cst = arith.constant dense<0.000000e+00> : vector<2xf32>
    %774 = vector.multi_reduction <add>, %773, %cst [1] : vector<2x8xf32> to vector<2xf32>
    %775 = vector.shape_cast %774 : vector<2xf32> to vector<2x1xf32>
    %776 = vector.broadcast %7 : vector<1x1xf32> to vector<2x1xf32>
    %777 = arith.addf %775, %776 : vector<2x1xf32>
    %c0_3 = arith.constant 0 : index
    %c0_4 = arith.constant 0 : index
    %778 = vector.load %arg2[%c0_3, %c0_4] : memref<2x1xf32, #tpu.memory_space<vmem>>, vector<2x1xf32>
    tpu.vector_store %arg2[%c0_3, %c0_4], %777 {strides = array<i32>} : memref<2x1xf32, #tpu.memory_space<vmem>>, vector<2x1xf32>,
    return
  }
}

</mosaic_0001>

<llo_original>
// kernel: rnn_forward.1
$region0: #{rnn_forward.1}
  #allocation0 [shape = 'u32[]', space=smem, size = 0x4, offset = 0x4, fixed_abs, tag = 'smem constant byte address 0x4 - core index']
  #allocation1 [shape = 'u32[144,128]{1,0:T(1,128)}', space=vmem, size = 0x12000, scoped, tag = 'internal scratch']
  %s0 = inlined_call_operand.vmem [shape: f32[2,8], index: 0, kind: input, shape index: {}]
  %s1 = inlined_call_operand.vmem [shape: f32[32,8], index: 1, kind: input, shape index: {}]
  %s2 = inlined_call_operand.vmem [shape: f32[2,1], index: 2, kind: output, shape index: {}]
  %s3 = sld [smem:[#allocation0]]
  $region18: #{rnn_forward.1} parent=0
    _
  %s5 = ssub.s32 1, %s3
  %s6 = scalar_select 0, %s5, %s3
  // Predicated region
  $region2: #{rnn_forward.1} parent=0 // pred_check
    _
  $region3: #{rnn_forward.1} parent=0 // pred_check_branch
    %8 = sbr.rel (0) target = $region5
  $region4: #{rnn_forward.1} parent=0 // pred_region
    _
  $region5: #{rnn_forward.1} parent=0 // pred_fallthru
    _
  // Predicated region
  $region6: #{rnn_forward.1} parent=0 // pred_check
    _
  $region7: #{rnn_forward.1} parent=0 // pred_check_branch
    %10 = sbr.rel (0) target = $region9
  $region8: #{rnn_forward.1} parent=0 // pred_region
    _
  $region9: #{rnn_forward.1} parent=0 // pred_fallthru
    _
  %v11 = vld [vmem:[%s0] sm:$0x3]
  %v12 = vld [vmem:[%s1] sm:$0xff]
  %v13 = vld [vmem:[%s1 + $0x8] sm:$0xff]
  %v14 = vld [vmem:[%s1 + $0x10] sm:$0xff]
  %v15 = vld [vmem:[%s1 + $0x18] sm:$0xff]
  %v16 = vlaneseq
  %v17 = vshrl.u32 %v16, 7
  %v18 = vsub.s32 0, %v17
  %v19 = vrot.slane %v13, %v18
  %v20 = vlaneseq
  %v21 = vshrl.u32 %v20, 7
  %v22 = vsub.s32 1, %v21
  %v23 = vrot.slane %v13, %v22
  %v24 = vlaneseq
  %v25 = vshrl.u32 %v24, 7
  %v26 = vsub.s32 2, %v25
  %v27 = vrot.slane %v13, %v26
  %v28 = vlaneseq
  %v29 = vshrl.u32 %v28, 7
  %v30 = vsub.s32 3, %v29
  %v31 = vrot.slane %v13, %v30
  %v32 = vlaneseq
  %v33 = vshrl.u32 %v32, 7
  %v34 = vsub.s32 4, %v33
  %v35 = vrot.slane %v13, %v34
  %v36 = vlaneseq
  %v37 = vshrl.u32 %v36, 7
  %v38 = vsub.s32 5, %v37
  %v39 = vrot.slane %v13, %v38
  %v40 = vlaneseq
  %v41 = vshrl.u32 %v40, 7
  %v42 = vsub.s32 6, %v41
  %v43 = vrot.slane %v13, %v42
  %v44 = vlaneseq
  %v45 = vshrl.u32 %v44, 7
  %v46 = vsub.s32 7, %v45
  %v47 = vrot.slane %v13, %v46
  %v48 = vlaneseq
  %v49 = vshrl.u32 %v48, 7
  %v50 = vsub.s32 0, %v49
  %v51 = vrot.slane %v14, %v50
  %v52 = vlaneseq
  %v53 = vshrl.u32 %v52, 7
  %v54 = vsub.s32 1, %v53
  %v55 = vrot.slane %v14, %v54
  %v56 = vlaneseq
  %v57 = vshrl.u32 %v56, 7
  %v58 = vsub.s32 2, %v57
  %v59 = vrot.slane %v14, %v58
  %v60 = vlaneseq
  %v61 = vshrl.u32 %v60, 7
  %v62 = vsub.s32 3, %v61
  %v63 = vrot.slane %v14, %v62
  %v64 = vlaneseq
  %v65 = vshrl.u32 %v64, 7
  %v66 = vsub.s32 4, %v65
  %v67 = vrot.slane %v14, %v66
  %v68 = vlaneseq
  %v69 = vshrl.u32 %v68, 7
  %v70 = vsub.s32 5, %v69
  %v71 = vrot.slane %v14, %v70
  %v72 = vlaneseq
  %v73 = vshrl.u32 %v72, 7
  %v74 = vsub.s32 6, %v73
  %v75 = vrot.slane %v14, %v74
  %v76 = vlaneseq
  %v77 = vshrl.u32 %v76, 7
  %v78 = vsub.s32 7, %v77
  %v79 = vrot.slane %v14, %v78
  %v80 = vlaneseq
  %v81 = vshrl.u32 %v80, 7
  %v82 = vsub.s32 0, %v81
  %v83 = vrot.slane %v15, %v82
  %v84 = vlaneseq
  %v85 = vshrl.u32 %v84, 7
  %v86 = vsub.s32 1, %v85
  %v87 = vrot.slane %v15, %v86
  %v88 = vlaneseq
  %v89 = vshrl.u32 %v88, 7
  %v90 = vsub.s32 2, %v89
  %v91 = vrot.slane %v15, %v90
  %v92 = vlaneseq
  %v93 = vshrl.u32 %v92, 7
  %v94 = vsub.s32 3, %v93
  %v95 = vrot.slane %v15, %v94
  %97 = vset.pattern.permute.xlu0 0
  %98 = vperm.xlu0 %97, %v11
  %v99 = vpop.permute.xlu0 %98
  %v101 = vlaneseq
  %v102 = vshrl.u32 %v101, 7
  %v103 = vsub.s32 0, %v102
  %v104 = vrot.slane %v12, %v103
  %v105 = vmul.f32 %v99, %v104
  %106 = vset.pattern.permute.xlu0 7
  %107 = vperm.xlu0 %106, %v11
  %v108 = vpop.permute.xlu0 %107
  %v110 = vlaneseq
  %v111 = vshrl.u32 %v110, 7
  %v112 = vsub.s32 1, %v111
  %v113 = vrot.slane %v12, %v112
  %v114 = vmul.f32 %v108, %v113
  %v115 = vadd.f32 %v105, %v114
  %v116 = vlaneseq
  %v117 = vshrl.u32 %v116, 7
  %v118 = vsub.s32 2, %v117
  %v119 = vrot.slane %v12, %v118
  %v120 = vadd.f32 %v115, %v119
  %121 = vset.pattern.permute.xlu0 1
  %122 = vperm.xlu0 %121, %v11
  %v123 = vpop.permute.xlu0 %122
  %v125 = vmul.f32 %v123, %v104
  %126 = vset.pattern.permute.xlu0 6
  %127 = vperm.xlu0 %126, %v11
  %v128 = vpop.permute.xlu0 %127
  %v130 = vmul.f32 %v128, %v113
  %v131 = vadd.f32 %v125, %v130
  %v132 = vadd.f32 %v131, %v119
  %133 = vset.pattern.permute.xlu0 2
  %134 = vperm.xlu0 %133, %v11
  %v135 = vpop.permute.xlu0 %134
  %v137 = vmul.f32 %v135, %v104
  %138 = vset.pattern.permute.xlu0 5
  %139 = vperm.xlu0 %138, %v11
  %v140 = vpop.permute.xlu0 %139
  %v142 = vmul.f32 %v140, %v113
  %v143 = vadd.f32 %v137, %v142
  %v144 = vadd.f32 %v143, %v119
  %145 = vset.pattern.permute.xlu0 3
  %146 = vperm.xlu0 %145, %v11
  %v147 = vpop.permute.xlu0 %146
  %v149 = vmul.f32 %v147, %v104
  %150 = vset.pattern.permute.xlu0 4
  %151 = vperm.xlu0 %150, %v11
  %v152 = vpop.permute.xlu0 %151
  %v154 = vmul.f32 %v152, %v113
  %v155 = vadd.f32 %v149, %v154
  %v156 = vadd.f32 %v155, %v119
  %v157 = vmul.f32 %v152, %v104
  %v158 = vmul.f32 %v147, %v113
  %v159 = vadd.f32 %v157, %v158
  %v160 = vadd.f32 %v159, %v119
  %v161 = vmul.f32 %v140, %v104
  %v162 = vmul.f32 %v135, %v113
  %v163 = vadd.f32 %v161, %v162
  %v164 = vadd.f32 %v163, %v119
  %v165 = vmul.f32 %v128, %v104
  %v166 = vmul.f32 %v123, %v113
  %v167 = vadd.f32 %v165, %v166
  %v168 = vadd.f32 %v167, %v119
  %v169 = vmul.f32 %v108, %v104
  %v170 = vmul.f32 %v99, %v113
  %v171 = vadd.f32 %v169, %v170
  %v172 = vadd.f32 %v171, %v119
  %v173 = vtanh.pop %v120
  %175 = vset.pattern.permute.xlu0 0
  %176 = vperm.xlu0 %175, %v173
  %v177 = vpop.permute.xlu0 %176
  %v179 = vmul.f32 %v177, %v19
  %180 = vset.pattern.permute.xlu0 1
  %181 = vperm.xlu0 %180, %v173
  %v182 = vpop.permute.xlu0 %181
  %v184 = vmul.f32 %v182, %v23
  %185 = vset.pattern.permute.xlu0 2
  %186 = vperm.xlu0 %185, %v173
  %v187 = vpop.permute.xlu0 %186
  %v189 = vmul.f32 %v187, %v27
  %190 = vset.pattern.permute.xlu0 3
  %191 = vperm.xlu0 %190, %v173
  %v192 = vpop.permute.xlu0 %191
  %v194 = vmul.f32 %v192, %v31
  %195 = vset.pattern.permute.xlu0 4
  %196 = vperm.xlu0 %195, %v173
  %v197 = vpop.permute.xlu0 %196
  %v199 = vmul.f32 %v197, %v35
  %200 = vset.pattern.permute.xlu0 5
  %201 = vperm.xlu0 %200, %v173
  %v202 = vpop.permute.xlu0 %201
  %v204 = vmul.f32 %v202, %v39
  %205 = vset.pattern.permute.xlu0 6
  %206 = vperm.xlu0 %205, %v173
  %v207 = vpop.permute.xlu0 %206
  %v209 = vmul.f32 %v207, %v43
  %210 = vset.pattern.permute.xlu0 7
  %211 = vperm.xlu0 %210, %v173
  %v212 = vpop.permute.xlu0 %211
  %v214 = vmul.f32 %v212, %v47
  %v215 = vadd.f32 %v179, %v184
  %v216 = vadd.f32 %v189, %v194
  %v217 = vadd.f32 %v199, %v204
  %v218 = vadd.f32 %v209, %v214
  %v219 = vadd.f32 %v215, %v216
  %v220 = vadd.f32 %v217, %v218
  %v221 = vadd.f32 %v219, %v220
  %v222 = vadd.f32 %v132, %v221
  %v223 = vtanh.pop %v222
  %225 = vset.pattern.permute.xlu0 0
  %226 = vperm.xlu0 %225, %v223
  %v227 = vpop.permute.xlu0 %226
  %v229 = vmul.f32 %v227, %v19
  %230 = vset.pattern.permute.xlu0 1
  %231 = vperm.xlu0 %230, %v223
  %v232 = vpop.permute.xlu0 %231
  %v234 = vmul.f32 %v232, %v23
  %235 = vset.pattern.permute.xlu0 2
  %236 = vperm.xlu0 %235, %v223
  %v237 = vpop.permute.xlu0 %236
  %v239 = vmul.f32 %v237, %v27
  %240 = vset.pattern.permute.xlu0 3
  %241 = vperm.xlu0 %240, %v223
  %v242 = vpop.permute.xlu0 %241
  %v244 = vmul.f32 %v242, %v31
  %245 = vset.pattern.permute.xlu0 4
  %246 = vperm.xlu0 %245, %v223
  %v247 = vpop.permute.xlu0 %246
  %v249 = vmul.f32 %v247, %v35
  %250 = vset.pattern.permute.xlu0 5
  %251 = vperm.xlu0 %250, %v223
  %v252 = vpop.permute.xlu0 %251
  %v254 = vmul.f32 %v252, %v39
  %255 = vset.pattern.permute.xlu0 6
  %256 = vperm.xlu0 %255, %v223
  %v257 = vpop.permute.xlu0 %256
  %v259 = vmul.f32 %v257, %v43
  %260 = vset.pattern.permute.xlu0 7
  %261 = vperm.xlu0 %260, %v223
  %v262 = vpop.permute.xlu0 %261
  %v264 = vmul.f32 %v262, %v47
  %v265 = vadd.f32 %v229, %v234
  %v266 = vadd.f32 %v239, %v244
  %v267 = vadd.f32 %v249, %v254
  %v268 = vadd.f32 %v259, %v264
  %v269 = vadd.f32 %v265, %v266
  %v270 = vadd.f32 %v267, %v268
  %v271 = vadd.f32 %v269, %v270
  %v272 = vadd.f32 %v144, %v271
  %v273 = vtanh.pop %v272
  %275 = vset.pattern.permute.xlu0 0
  %276 = vperm.xlu0 %275, %v273
  %v277 = vpop.permute.xlu0 %276
  %v279 = vmul.f32 %v277, %v19
  %280 = vset.pattern.permute.xlu0 1
  %281 = vperm.xlu0 %280, %v273
  %v282 = vpop.permute.xlu0 %281
  %v284 = vmul.f32 %v282, %v23
  %285 = vset.pattern.permute.xlu0 2
  %286 = vperm.xlu0 %285, %v273
  %v287 = vpop.permute.xlu0 %286
  %v289 = vmul.f32 %v287, %v27
  %290 = vset.pattern.permute.xlu0 3
  %291 = vperm.xlu0 %290, %v273
  %v292 = vpop.permute.xlu0 %291
  %v294 = vmul.f32 %v292, %v31
  %295 = vset.pattern.permute.xlu0 4
  %296 = vperm.xlu0 %295, %v273
  %v297 = vpop.permute.xlu0 %296
  %v299 = vmul.f32 %v297, %v35
  %300 = vset.pattern.permute.xlu0 5
  %301 = vperm.xlu0 %300, %v273
  %v302 = vpop.permute.xlu0 %301
  %v304 = vmul.f32 %v302, %v39
  %305 = vset.pattern.permute.xlu0 6
  %306 = vperm.xlu0 %305, %v273
  %v307 = vpop.permute.xlu0 %306
  %v309 = vmul.f32 %v307, %v43
  %310 = vset.pattern.permute.xlu0 7
  %311 = vperm.xlu0 %310, %v273
  %v312 = vpop.permute.xlu0 %311
  %v314 = vmul.f32 %v312, %v47
  %v315 = vadd.f32 %v279, %v284
  %v316 = vadd.f32 %v289, %v294
  %v317 = vadd.f32 %v299, %v304
  %v318 = vadd.f32 %v309, %v314
  %v319 = vadd.f32 %v315, %v316
  %v320 = vadd.f32 %v317, %v318
  %v321 = vadd.f32 %v319, %v320
  %v322 = vadd.f32 %v156, %v321
  %v323 = vtanh.pop %v322
  %325 = vset.pattern.permute.xlu0 0
  %326 = vperm.xlu0 %325, %v323
  %v327 = vpop.permute.xlu0 %326
  %v329 = vmul.f32 %v327, %v19
  %330 = vset.pattern.permute.xlu0 1
  %331 = vperm.xlu0 %330, %v323
  %v332 = vpop.permute.xlu0 %331
  %v334 = vmul.f32 %v332, %v23
  %335 = vset.pattern.permute.xlu0 2
  %336 = vperm.xlu0 %335, %v323
  %v337 = vpop.permute.xlu0 %336
  %v339 = vmul.f32 %v337, %v27
  %340 = vset.pattern.permute.xlu0 3
  %341 = vperm.xlu0 %340, %v323
  %v342 = vpop.permute.xlu0 %341
  %v344 = vmul.f32 %v342, %v31
  %345 = vset.pattern.permute.xlu0 4
  %346 = vperm.xlu0 %345, %v323
  %v347 = vpop.permute.xlu0 %346
  %v349 = vmul.f32 %v347, %v35
  %350 = vset.pattern.permute.xlu0 5
  %351 = vperm.xlu0 %350, %v323
  %v352 = vpop.permute.xlu0 %351
  %v354 = vmul.f32 %v352, %v39
  %355 = vset.pattern.permute.xlu0 6
  %356 = vperm.xlu0 %355, %v323
  %v357 = vpop.permute.xlu0 %356
  %v359 = vmul.f32 %v357, %v43
  %360 = vset.pattern.permute.xlu0 7
  %361 = vperm.xlu0 %360, %v323
  %v362 = vpop.permute.xlu0 %361
  %v364 = vmul.f32 %v362, %v47
  %v365 = vadd.f32 %v329, %v334
  %v366 = vadd.f32 %v339, %v344
  %v367 = vadd.f32 %v349, %v354
  %v368 = vadd.f32 %v359, %v364
  %v369 = vadd.f32 %v365, %v366
  %v370 = vadd.f32 %v367, %v368
  %v371 = vadd.f32 %v369, %v370
  %v372 = vadd.f32 %v160, %v371
  %v373 = vtanh.pop %v372
  %375 = vset.pattern.permute.xlu0 0
  %376 = vperm.xlu0 %375, %v373
  %v377 = vpop.permute.xlu0 %376
  %v379 = vmul.f32 %v377, %v19
  %380 = vset.pattern.permute.xlu0 1
  %381 = vperm.xlu0 %380, %v373
  %v382 = vpop.permute.xlu0 %381
  %v384 = vmul.f32 %v382, %v23
  %385 = vset.pattern.permute.xlu0 2
  %386 = vperm.xlu0 %385, %v373
  %v387 = vpop.permute.xlu0 %386
  %v389 = vmul.f32 %v387, %v27
  %390 = vset.pattern.permute.xlu0 3
  %391 = vperm.xlu0 %390, %v373
  %v392 = vpop.permute.xlu0 %391
  %v394 = vmul.f32 %v392, %v31
  %395 = vset.pattern.permute.xlu0 4
  %396 = vperm.xlu0 %395, %v373
  %v397 = vpop.permute.xlu0 %396
  %v399 = vmul.f32 %v397, %v35
  %400 = vset.pattern.permute.xlu0 5
  %401 = vperm.xlu0 %400, %v373
  %v402 = vpop.permute.xlu0 %401
  %v404 = vmul.f32 %v402, %v39
  %405 = vset.pattern.permute.xlu0 6
  %406 = vperm.xlu0 %405, %v373
  %v407 = vpop.permute.xlu0 %406
  %v409 = vmul.f32 %v407, %v43
  %410 = vset.pattern.permute.xlu0 7
  %411 = vperm.xlu0 %410, %v373
  %v412 = vpop.permute.xlu0 %411
  %v414 = vmul.f32 %v412, %v47
  %v415 = vadd.f32 %v379, %v384
  %v416 = vadd.f32 %v389, %v394
  %v417 = vadd.f32 %v399, %v404
  %v418 = vadd.f32 %v409, %v414
  %v419 = vadd.f32 %v415, %v416
  %v420 = vadd.f32 %v417, %v418
  %v421 = vadd.f32 %v419, %v420
  %v422 = vadd.f32 %v164, %v421
  %v423 = vtanh.pop %v422
  %425 = vset.pattern.permute.xlu0 0
  %426 = vperm.xlu0 %425, %v423
  %v427 = vpop.permute.xlu0 %426
  %v429 = vmul.f32 %v427, %v19
  %430 = vset.pattern.permute.xlu0 1
  %431 = vperm.xlu0 %430, %v423
  %v432 = vpop.permute.xlu0 %431
  %v434 = vmul.f32 %v432, %v23
  %435 = vset.pattern.permute.xlu0 2
  %436 = vperm.xlu0 %435, %v423
  %v437 = vpop.permute.xlu0 %436
  %v439 = vmul.f32 %v437, %v27
  %440 = vset.pattern.permute.xlu0 3
  %441 = vperm.xlu0 %440, %v423
  %v442 = vpop.permute.xlu0 %441
  %v444 = vmul.f32 %v442, %v31
  %445 = vset.pattern.permute.xlu0 4
  %446 = vperm.xlu0 %445, %v423
  %v447 = vpop.permute.xlu0 %446
  %v449 = vmul.f32 %v447, %v35
  %450 = vset.pattern.permute.xlu0 5
  %451 = vperm.xlu0 %450, %v423
  %v452 = vpop.permute.xlu0 %451
  %v454 = vmul.f32 %v452, %v39
  %455 = vset.pattern.permute.xlu0 6
  %456 = vperm.xlu0 %455, %v423
  %v457 = vpop.permute.xlu0 %456
  %v459 = vmul.f32 %v457, %v43
  %460 = vset.pattern.permute.xlu0 7
  %461 = vperm.xlu0 %460, %v423
  %v462 = vpop.permute.xlu0 %461
  %v464 = vmul.f32 %v462, %v47
  %v465 = vadd.f32 %v429, %v434
  %v466 = vadd.f32 %v439, %v444
  %v467 = vadd.f32 %v449, %v454
  %v468 = vadd.f32 %v459, %v464
  %v469 = vadd.f32 %v465, %v466
  %v470 = vadd.f32 %v467, %v468
  %v471 = vadd.f32 %v469, %v470
  %v472 = vadd.f32 %v168, %v471
  %v473 = vtanh.pop %v472
  %475 = vset.pattern.permute.xlu0 0
  %476 = vperm.xlu0 %475, %v473
  %v477 = vpop.permute.xlu0 %476
  %v479 = vmul.f32 %v477, %v19
  %480 = vset.pattern.permute.xlu0 1
  %481 = vperm.xlu0 %480, %v473
  %v482 = vpop.permute.xlu0 %481
  %v484 = vmul.f32 %v482, %v23
  %485 = vset.pattern.permute.xlu0 2
  %486 = vperm.xlu0 %485, %v473
  %v487 = vpop.permute.xlu0 %486
  %v489 = vmul.f32 %v487, %v27
  %490 = vset.pattern.permute.xlu0 3
  %491 = vperm.xlu0 %490, %v473
  %v492 = vpop.permute.xlu0 %491
  %v494 = vmul.f32 %v492, %v31
  %495 = vset.pattern.permute.xlu0 4
  %496 = vperm.xlu0 %495, %v473
  %v497 = vpop.permute.xlu0 %496
  %v499 = vmul.f32 %v497, %v35
  %500 = vset.pattern.permute.xlu0 5
  %501 = vperm.xlu0 %500, %v473
  %v502 = vpop.permute.xlu0 %501
  %v504 = vmul.f32 %v502, %v39
  %505 = vset.pattern.permute.xlu0 6
  %506 = vperm.xlu0 %505, %v473
  %v507 = vpop.permute.xlu0 %506
  %v509 = vmul.f32 %v507, %v43
  %510 = vset.pattern.permute.xlu0 7
  %511 = vperm.xlu0 %510, %v473
  %v512 = vpop.permute.xlu0 %511
  %v514 = vmul.f32 %v512, %v47
  %v515 = vadd.f32 %v479, %v484
  %v516 = vadd.f32 %v489, %v494
  %v517 = vadd.f32 %v499, %v504
  %v518 = vadd.f32 %v509, %v514
  %v519 = vadd.f32 %v515, %v516
  %v520 = vadd.f32 %v517, %v518
  %v521 = vadd.f32 %v519, %v520
  %v522 = vadd.f32 %v172, %v521
  %v523 = vtanh.pop %v522
  %v524 = vmul.f32 %v177, %v51
  %v525 = vmul.f32 %v182, %v55
  %v526 = vmul.f32 %v187, %v59
  %v527 = vmul.f32 %v192, %v63
  %529 = vset.pattern.permute.xlu0 4
  %530 = vperm.xlu0 %529, %v523
  %v531 = vpop.permute.xlu0 %530
  %v533 = vmul.f32 %v531, %v67
  %534 = vset.pattern.permute.xlu0 5
  %535 = vperm.xlu0 %534, %v523
  %v536 = vpop.permute.xlu0 %535
  %v538 = vmul.f32 %v536, %v71
  %539 = vset.pattern.permute.xlu0 6
  %540 = vperm.xlu0 %539, %v523
  %v541 = vpop.permute.xlu0 %540
  %v543 = vmul.f32 %v541, %v75
  %544 = vset.pattern.permute.xlu0 7
  %545 = vperm.xlu0 %544, %v523
  %v546 = vpop.permute.xlu0 %545
  %v548 = vmul.f32 %v546, %v79
  %v549 = vadd.f32 %v524, %v525
  %v550 = vadd.f32 %v526, %v527
  %v551 = vadd.f32 %v533, %v538
  %v552 = vadd.f32 %v543, %v548
  %v553 = vadd.f32 %v549, %v550
  %v554 = vadd.f32 %v551, %v552
  %v555 = vadd.f32 %v553, %v554
  %v556 = vlaneseq
  %v557 = vshrl.u32 %v556, 7
  %v558 = vsub.s32 3, %v557
  %v559 = vrot.slane %v12, %v558
  %v560 = vadd.f32 %v555, %v559
  %v561 = vtanh.pop %v560
  %563 = vset.pattern.permute.xlu0 0
  %564 = vperm.xlu0 %563, %v561
  %v565 = vpop.permute.xlu0 %564
  %v567 = vmul.f32 %v565, %v83
  %568 = vset.pattern.permute.xlu0 1
  %569 = vperm.xlu0 %568, %v561
  %v570 = vpop.permute.xlu0 %569
  %v572 = vmul.f32 %v570, %v87
  %573 = vset.pattern.permute.xlu0 2
  %574 = vperm.xlu0 %573, %v561
  %v575 = vpop.permute.xlu0 %574
  %v577 = vmul.f32 %v575, %v91
  %578 = vset.pattern.permute.xlu0 3
  %579 = vperm.xlu0 %578, %v561
  %v580 = vpop.permute.xlu0 %579
  %v582 = vmul.f32 %v580, %v95
  %v583 = vadd.f32 %v567, %v572
  %v584 = vadd.f32 %v577, %v582
  %v585 = vadd.f32 %v583, %v584
  %v586 = vmul.f32 %v227, %v51
  %v587 = vmul.f32 %v232, %v55
  %v588 = vmul.f32 %v237, %v59
  %v589 = vmul.f32 %v242, %v63
  %v590 = vmul.f32 %v497, %v67
  %v591 = vmul.f32 %v502, %v71
  %v592 = vmul.f32 %v507, %v75
  %v593 = vmul.f32 %v512, %v79
  %v594 = vadd.f32 %v586, %v587
  %v595 = vadd.f32 %v588, %v589
  %v596 = vadd.f32 %v590, %v591
  %v597 = vadd.f32 %v592, %v593
  %v598 = vadd.f32 %v594, %v595
  %v599 = vadd.f32 %v596, %v597
  %v600 = vadd.f32 %v598, %v599
  %v601 = vadd.f32 %v600, %v559
  %v602 = vadd.f32 %v601, %v585
  %v603 = vtanh.pop %v602
  %605 = vset.pattern.permute.xlu0 0
  %606 = vperm.xlu0 %605, %v603
  %v607 = vpop.permute.xlu0 %606
  %v609 = vmul.f32 %v607, %v83
  %610 = vset.pattern.permute.xlu0 1
  %611 = vperm.xlu0 %610, %v603
  %v612 = vpop.permute.xlu0 %611
  %v614 = vmul.f32 %v612, %v87
  %615 = vset.pattern.permute.xlu0 2
  %616 = vperm.xlu0 %615, %v603
  %v617 = vpop.permute.xlu0 %616
  %v619 = vmul.f32 %v617, %v91
  %620 = vset.pattern.permute.xlu0 3
  %621 = vperm.xlu0 %620, %v603
  %v622 = vpop.permute.xlu0 %621
  %v624 = vmul.f32 %v622, %v95
  %v625 = vadd.f32 %v609, %v614
  %v626 = vadd.f32 %v619, %v624
  %v627 = vadd.f32 %v625, %v626
  %v628 = vmul.f32 %v277, %v51
  %v629 = vmul.f32 %v282, %v55
  %v630 = vmul.f32 %v287, %v59
  %v631 = vmul.f32 %v292, %v63
  %v632 = vmul.f32 %v447, %v67
  %v633 = vmul.f32 %v452, %v71
  %v634 = vmul.f32 %v457, %v75
  %v635 = vmul.f32 %v462, %v79
  %v636 = vadd.f32 %v628, %v629
  %v637 = vadd.f32 %v630, %v631
  %v638 = vadd.f32 %v632, %v633
  %v639 = vadd.f32 %v634, %v635
  %v640 = vadd.f32 %v636, %v637
  %v641 = vadd.f32 %v638, %v639
  %v642 = vadd.f32 %v640, %v641
  %v643 = vadd.f32 %v642, %v559
  %v644 = vadd.f32 %v643, %v627
  %v645 = vtanh.pop %v644
  %647 = vset.pattern.permute.xlu0 0
  %648 = vperm.xlu0 %647, %v645
  %v649 = vpop.permute.xlu0 %648
  %v651 = vmul.f32 %v649, %v83
  %652 = vset.pattern.permute.xlu0 1
  %653 = vperm.xlu0 %652, %v645
  %v654 = vpop.permute.xlu0 %653
  %v656 = vmul.f32 %v654, %v87
  %657 = vset.pattern.permute.xlu0 2
  %658 = vperm.xlu0 %657, %v645
  %v659 = vpop.permute.xlu0 %658
  %v661 = vmul.f32 %v659, %v91
  %662 = vset.pattern.permute.xlu0 3
  %663 = vperm.xlu0 %662, %v645
  %v664 = vpop.permute.xlu0 %663
  %v666 = vmul.f32 %v664, %v95
  %v667 = vadd.f32 %v651, %v656
  %v668 = vadd.f32 %v661, %v666
  %v669 = vadd.f32 %v667, %v668
  %v670 = vmul.f32 %v327, %v51
  %v671 = vmul.f32 %v332, %v55
  %v672 = vmul.f32 %v337, %v59
  %v673 = vmul.f32 %v342, %v63
  %v674 = vmul.f32 %v397, %v67
  %v675 = vmul.f32 %v402, %v71
  %v676 = vmul.f32 %v407, %v75
  %v677 = vmul.f32 %v412, %v79
  %v678 = vadd.f32 %v670, %v671
  %v679 = vadd.f32 %v672, %v673
  %v680 = vadd.f32 %v674, %v675
  %v681 = vadd.f32 %v676, %v677
  %v682 = vadd.f32 %v678, %v679
  %v683 = vadd.f32 %v680, %v681
  %v684 = vadd.f32 %v682, %v683
  %v685 = vadd.f32 %v684, %v559
  %v686 = vadd.f32 %v685, %v669
  %v687 = vtanh.pop %v686
  %689 = vset.pattern.permute.xlu0 0
  %690 = vperm.xlu0 %689, %v687
  %v691 = vpop.permute.xlu0 %690
  %v693 = vmul.f32 %v691, %v83
  %694 = vset.pattern.permute.xlu0 1
  %695 = vperm.xlu0 %694, %v687
  %v696 = vpop.permute.xlu0 %695
  %v698 = vmul.f32 %v696, %v87
  %699 = vset.pattern.permute.xlu0 2
  %700 = vperm.xlu0 %699, %v687
  %v701 = vpop.permute.xlu0 %700
  %v703 = vmul.f32 %v701, %v91
  %704 = vset.pattern.permute.xlu0 3
  %705 = vperm.xlu0 %704, %v687
  %v706 = vpop.permute.xlu0 %705
  %v708 = vmul.f32 %v706, %v95
  %v709 = vadd.f32 %v693, %v698
  %v710 = vadd.f32 %v703, %v708
  %v711 = vadd.f32 %v709, %v710
  %v712 = vmul.f32 %v377, %v51
  %v713 = vmul.f32 %v382, %v55
  %v714 = vmul.f32 %v387, %v59
  %v715 = vmul.f32 %v392, %v63
  %v716 = vmul.f32 %v347, %v67
  %v717 = vmul.f32 %v352, %v71
  %v718 = vmul.f32 %v357, %v75
  %v719 = vmul.f32 %v362, %v79
  %v720 = vadd.f32 %v712, %v713
  %v721 = vadd.f32 %v714, %v715
  %v722 = vadd.f32 %v716, %v717
  %v723 = vadd.f32 %v718, %v719
  %v724 = vadd.f32 %v720, %v721
  %v725 = vadd.f32 %v722, %v723
  %v726 = vadd.f32 %v724, %v725
  %v727 = vadd.f32 %v726, %v559
  %v728 = vadd.f32 %v727, %v711
  %v729 = vtanh.pop %v728
  %731 = vset.pattern.permute.xlu0 0
  %732 = vperm.xlu0 %731, %v729
  %v733 = vpop.permute.xlu0 %732
  %v735 = vmul.f32 %v733, %v83
  %736 = vset.pattern.permute.xlu0 1
  %737 = vperm.xlu0 %736, %v729
  %v738 = vpop.permute.xlu0 %737
  %v740 = vmul.f32 %v738, %v87
  %741 = vset.pattern.permute.xlu0 2
  %742 = vperm.xlu0 %741, %v729
  %v743 = vpop.permute.xlu0 %742
  %v745 = vmul.f32 %v743, %v91
  %746 = vset.pattern.permute.xlu0 3
  %747 = vperm.xlu0 %746, %v729
  %v748 = vpop.permute.xlu0 %747
  %v750 = vmul.f32 %v748, %v95
  %v751 = vadd.f32 %v735, %v740
  %v752 = vadd.f32 %v745, %v750
  %v753 = vadd.f32 %v751, %v752
  %v754 = vmul.f32 %v427, %v51
  %v755 = vmul.f32 %v432, %v55
  %v756 = vmul.f32 %v437, %v59
  %v757 = vmul.f32 %v442, %v63
  %v758 = vmul.f32 %v297, %v67
  %v759 = vmul.f32 %v302, %v71
  %v760 = vmul.f32 %v307, %v75
  %v761 = vmul.f32 %v312, %v79
  %v762 = vadd.f32 %v754, %v755
  %v763 = vadd.f32 %v756, %v757
  %v764 = vadd.f32 %v758, %v759
  %v765 = vadd.f32 %v760, %v761
  %v766 = vadd.f32 %v762, %v763
  %v767 = vadd.f32 %v764, %v765
  %v768 = vadd.f32 %v766, %v767
  %v769 = vadd.f32 %v768, %v559
  %v770 = vadd.f32 %v769, %v753
  %v771 = vtanh.pop %v770
  %773 = vset.pattern.permute.xlu0 0
  %774 = vperm.xlu0 %773, %v771
  %v775 = vpop.permute.xlu0 %774
  %v777 = vmul.f32 %v775, %v83
  %778 = vset.pattern.permute.xlu0 1
  %779 = vperm.xlu0 %778, %v771
  %v780 = vpop.permute.xlu0 %779
  %v782 = vmul.f32 %v780, %v87
  %783 = vset.pattern.permute.xlu0 2
  %784 = vperm.xlu0 %783, %v771
  %v785 = vpop.permute.xlu0 %784
  %v787 = vmul.f32 %v785, %v91
  %788 = vset.pattern.permute.xlu0 3
  %789 = vperm.xlu0 %788, %v771
  %v790 = vpop.permute.xlu0 %789
  %v792 = vmul.f32 %v790, %v95
  %v793 = vadd.f32 %v777, %v782
  %v794 = vadd.f32 %v787, %v792
  %v795 = vadd.f32 %v793, %v794
  %v796 = vmul.f32 %v477, %v51
  %v797 = vmul.f32 %v482, %v55
  %v798 = vmul.f32 %v487, %v59
  %v799 = vmul.f32 %v492, %v63
  %v800 = vmul.f32 %v247, %v67
  %v801 = vmul.f32 %v252, %v71
  %v802 = vmul.f32 %v257, %v75
  %v803 = vmul.f32 %v262, %v79
  %v804 = vadd.f32 %v796, %v797
  %v805 = vadd.f32 %v798, %v799
  %v806 = vadd.f32 %v800, %v801
  %v807 = vadd.f32 %v802, %v803
  %v808 = vadd.f32 %v804, %v805
  %v809 = vadd.f32 %v806, %v807
  %v810 = vadd.f32 %v808, %v809
  %v811 = vadd.f32 %v810, %v559
  %v812 = vadd.f32 %v811, %v795
  %v813 = vtanh.pop %v812
  %815 = vset.pattern.permute.xlu0 0
  %816 = vperm.xlu0 %815, %v813
  %v817 = vpop.permute.xlu0 %816
  %v819 = vmul.f32 %v817, %v83
  %820 = vset.pattern.permute.xlu0 1
  %821 = vperm.xlu0 %820, %v813
  %v822 = vpop.permute.xlu0 %821
  %v824 = vmul.f32 %v822, %v87
  %825 = vset.pattern.permute.xlu0 2
  %826 = vperm.xlu0 %825, %v813
  %v827 = vpop.permute.xlu0 %826
  %v829 = vmul.f32 %v827, %v91
  %830 = vset.pattern.permute.xlu0 3
  %831 = vperm.xlu0 %830, %v813
  %v832 = vpop.permute.xlu0 %831
  %v834 = vmul.f32 %v832, %v95
  %v835 = vadd.f32 %v819, %v824
  %v836 = vadd.f32 %v829, %v834
  %v837 = vadd.f32 %v835, %v836
  %838 = vset.pattern.permute.xlu0 0
  %839 = vperm.xlu0 %838, %v523
  %v840 = vpop.permute.xlu0 %839
  %v842 = vmul.f32 %v840, %v51
  %843 = vset.pattern.permute.xlu0 1
  %844 = vperm.xlu0 %843, %v523
  %v845 = vpop.permute.xlu0 %844
  %v847 = vmul.f32 %v845, %v55
  %848 = vset.pattern.permute.xlu0 2
  %849 = vperm.xlu0 %848, %v523
  %v850 = vpop.permute.xlu0 %849
  %v852 = vmul.f32 %v850, %v59
  %853 = vset.pattern.permute.xlu0 3
  %854 = vperm.xlu0 %853, %v523
  %v855 = vpop.permute.xlu0 %854
  %v857 = vmul.f32 %v855, %v63
  %v858 = vmul.f32 %v197, %v67
  %v859 = vmul.f32 %v202, %v71
  %v860 = vmul.f32 %v207, %v75
  %v861 = vmul.f32 %v212, %v79
  %v862 = vadd.f32 %v842, %v847
  %v863 = vadd.f32 %v852, %v857
  %v864 = vadd.f32 %v858, %v859
  %v865 = vadd.f32 %v860, %v861
  %v866 = vadd.f32 %v862, %v863
  %v867 = vadd.f32 %v864, %v865
  %v868 = vadd.f32 %v866, %v867
  %v869 = vadd.f32 %v868, %v559
  %v870 = vadd.f32 %v869, %v837
  %v871 = vtanh.pop %v870
  %v872 = vlaneseq
  %v873 = vshrl.u32 %v872, 7
  %v874 = vsub.s32 4, %v873
  %v875 = vrot.slane %v12, %v874
  %v876 = vmul.f32 %v871, %v875
  %vm877 = vcmask 58368
  %v878 = vsel %vm877, %v876, 0.0
  %879 = vadd.xlane.f32.xlu0 %v878
  %v880 = vpop.xlane.xlu0 %879
  %v881 = vlaneseq
  %v882 = vshrl.u32 %v881, 7
  %v883 = vsub.s32 5, %v882
  %v884 = vrot.slane %v12, %v883
  %v885 = vadd.f32 %v880, %v884
  %vm886 = vcmask 1024
  %887 = vst.msk [vmem:[%s2] sm:$0x3] %vm886, %v885
  // Predicated region
  $region10: #{rnn_forward.1} parent=0 // pred_check
    _
  $region11: #{rnn_forward.1} parent=0 // pred_check_branch
    %889 = sbr.rel (0) target = $region13
  $region12: #{rnn_forward.1} parent=0 // pred_region
    _
  $region13: #{rnn_forward.1} parent=0 // pred_fallthru
    _
  // Predicated region
  $region14: #{rnn_forward.1} parent=0 // pred_check
    _
  $region15: #{rnn_forward.1} parent=0 // pred_check_branch
    %891 = sbr.rel (0) target = $region17
  $region16: #{rnn_forward.1} parent=0 // pred_region
    _
  $region17: #{rnn_forward.1} parent=0 // pred_fallthru
    _

</llo_original>
